<compile_context>
chip_gen: v5e
topology: v5e:2x2
jax: 0.10.0
libtpu: 0.0.40
codegen_flags: <defaults>
</compile_context>

<pallas_src>
import functools

import jax
import jax.numpy as jnp
from jax import lax
from jax.experimental import pallas as pl

# ---------------- small synthetic BERT config ----------------
VOCAB = 100
TYPE_VOCAB = 2
MAX_POS = 16
HIDDEN = 32
NUM_HEADS = 2
HEAD_DIM = HIDDEN // NUM_HEADS
INTER = 64
NUM_LAYERS = 2
LN_EPS = 1e-12


# ---------------- in-kernel helpers (f32 elementwise path) ----------------
def _layer_norm(x, g, b):
    mu = jnp.mean(x, axis=-1, keepdims=True)
    var = jnp.mean((x - mu) ** 2, axis=-1, keepdims=True)
    return (x - mu) * lax.rsqrt(var + LN_EPS) * g + b


def _gelu(x):
    # TODO(synk): HF BertModel default 'gelu' is the exact erf form; tanh approx kept (~1e-3 diff).
    c = 0.7978845608028654
    return 0.5 * x * (1.0 + jnp.tanh(c * (x + 0.044715 * x * x * x)))


# ---------------- fused Pallas kernel: embeddings + LN + all encoder layers ----------------
def _fused_bert_kernel(ids_ref, seg_ref, mask_ref,
                       wemb_ref, temb_ref, pemb_ref, eg_ref, eb_ref,
                       wq_ref, bq_ref, wk_ref, bk_ref, wv_ref, bv_ref,
                       wo_ref, bo_ref, g1_ref, be1_ref,
                       w1_ref, b1_ref, w2_ref, b2_ref, g2_ref, be2_ref,
                       out_ref, *, B, S):
    f32 = jnp.float32
    bf16 = jnp.bfloat16
    BS = B * S

    # --- in-kernel embedding lookup: one-hot @ table (MXU gather, no HBM (B,S,H) temps) ---
    ids = ids_ref[...]                                            # (BS, 1) int32
    seg = seg_ref[...]                                            # (BS, 1) int32
    word_oh = (ids == lax.broadcasted_iota(jnp.int32, (BS, VOCAB), 1)).astype(f32)
    type_oh = (seg == lax.broadcasted_iota(jnp.int32, (BS, TYPE_VOCAB), 1)).astype(f32)
    we = jnp.dot(word_oh, wemb_ref[...], preferred_element_type=f32)   # (BS, H)
    te = jnp.dot(type_oh, temb_ref[...], preferred_element_type=f32)   # (BS, H)
    x = _layer_norm(we + pemb_ref[...] + te, eg_ref[...], eb_ref[...])  # (BS, H) f32

    # additive attention-mask bias (HF convention), kept in f32
    bias = (1.0 - mask_ref[...]) * (-10000.0)                     # (B, S)
    scale = 1.0 / (HEAD_DIM ** 0.5)

    for l in range(NUM_LAYERS):                                   # unrolled (2 layers)
        # --- fused-head QKV projections: bf16 operands, f32 accumulation ---
        xb = x.astype(bf16)
        q = jnp.dot(xb, wq_ref[l], preferred_element_type=f32) + bq_ref[l]   # (BS, H)
        k = jnp.dot(xb, wk_ref[l], preferred_element_type=f32) + bk_ref[l]
        v = jnp.dot(xb, wv_ref[l], preferred_element_type=f32) + bv_ref[l]

        ctx_rows = []
        for b in range(B):                                        # static unroll
            r0 = b * S
            bias_b = bias[b:b + 1, :]                             # (1, S)
            heads = []
            for h in range(NUM_HEADS):                            # static unroll
                c0 = h * HEAD_DIM
                qh = q[r0:r0 + S, c0:c0 + HEAD_DIM]               # (S, HEAD_DIM)
                kh = k[r0:r0 + S, c0:c0 + HEAD_DIM]
                vh = v[r0:r0 + S, c0:c0 + HEAD_DIM]
                s = lax.dot_general(qh, kh, (((1,), (1,)), ((), ())),
                                    preferred_element_type=f32) * scale + bias_b
                s = s - jnp.max(s, axis=-1, keepdims=True)
                p = jnp.exp(s)
                p = p * pl.reciprocal(jnp.sum(p, axis=-1, keepdims=True), approx=True)
                heads.append(jnp.dot(p, vh, preferred_element_type=f32))     # (S, HEAD_DIM)
            ctx_rows.append(jnp.concatenate(heads, axis=-1))      # (S, H) head-concat
        ctx = jnp.concatenate(ctx_rows, axis=0)                   # (BS, H)

        # single output projection over the whole flattened batch
        attn = jnp.dot(ctx.astype(bf16), wo_ref[l], preferred_element_type=f32) + bo_ref[l]
        h1 = _layer_norm(attn + x, g1_ref[l], be1_ref[l])

        # --- feed-forward ---
        inter = _gelu(jnp.dot(h1.astype(bf16), w1_ref[l],
                              preferred_element_type=f32) + b1_ref[l])
        ff = jnp.dot(inter.astype(bf16), w2_ref[l],
                     preferred_element_type=f32) + b2_ref[l]
        x = _layer_norm(ff + h1, g2_ref[l], be2_ref[l])

    out_ref[...] = x                                              # (BS, H) f32


# ---------------- parameter init (deterministic, synthetic) ----------------
def init_params(key):
    std = 0.02
    f32 = jnp.float32
    bf16 = jnp.bfloat16
    keys = jax.random.split(key, 3 + NUM_LAYERS)
    params = {
        "word_emb": std * jax.random.normal(keys[0], (VOCAB, HIDDEN), f32),
        "pos_emb": std * jax.random.normal(keys[1], (MAX_POS, HIDDEN), f32),
        "type_emb": std * jax.random.normal(keys[2], (TYPE_VOCAB, HIDDEN), f32),
        "emb_ln_g": jnp.ones((1, HIDDEN), f32),
        "emb_ln_b": jnp.zeros((1, HIDDEN), f32),
    }
    wq, wk, wv, wo, w1, w2 = [], [], [], [], [], []
    for l in range(NUM_LAYERS):
        k = jax.random.split(keys[3 + l], 6)
        wq.append(std * jax.random.normal(k[0], (HIDDEN, HIDDEN), f32))   # heads concatenated
        wk.append(std * jax.random.normal(k[1], (HIDDEN, HIDDEN), f32))
        wv.append(std * jax.random.normal(k[2], (HIDDEN, HIDDEN), f32))
        wo.append(std * jax.random.normal(k[3], (HIDDEN, HIDDEN), f32))
        w1.append(std * jax.random.normal(k[4], (HIDDEN, INTER), f32))
        w2.append(std * jax.random.normal(k[5], (INTER, HIDDEN), f32))
    L = NUM_LAYERS
    # Matmul weights pre-cast to bf16 (MXU operands); biases / LN params stay f32 as (1, H) rows.
    params["layer_stack"] = [
        jnp.stack(wq).astype(bf16),                   # wq  (L, H, H)
        jnp.zeros((L, 1, HIDDEN), f32),               # bq
        jnp.stack(wk).astype(bf16),                   # wk
        jnp.zeros((L, 1, HIDDEN), f32),               # bk
        jnp.stack(wv).astype(bf16),                   # wv
        jnp.zeros((L, 1, HIDDEN), f32),               # bv
        jnp.stack(wo).astype(bf16),                   # wo  (L, H, H)
        jnp.zeros((L, 1, HIDDEN), f32),               # bo
        jnp.ones((L, 1, HIDDEN), f32),                # LN1 gamma
        jnp.zeros((L, 1, HIDDEN), f32),               # LN1 beta
        jnp.stack(w1).astype(bf16),                   # w1  (L, H, INTER)
        jnp.zeros((L, 1, INTER), f32),                # b1
        jnp.stack(w2).astype(bf16),                   # w2  (L, INTER, H)
        jnp.zeros((L, 1, HIDDEN), f32),               # b2
        jnp.ones((L, 1, HIDDEN), f32),                # LN2 gamma
        jnp.zeros((L, 1, HIDDEN), f32),               # LN2 beta
    ]
    return params


# ---------------- forward (mirrors BertTextEncoder.forward) ----------------
def bert_text_encoder_forward(params, text):
    # text: (B, 3, S) -> input_ids (long), input_mask (float), segment_ids (long)
    input_ids = text[:, 0, :].astype(jnp.int32)
    input_mask = text[:, 1, :].astype(jnp.float32)
    segment_ids = text[:, 2, :].astype(jnp.int32)
    B, S = input_ids.shape
    BS = B * S

    ids2 = input_ids.reshape(BS, 1)
    seg2 = segment_ids.reshape(BS, 1)
    # position embeddings pre-tiled to the flattened (B*S, H) row layout
    pe = jnp.tile(params["pos_emb"][:S], (B, 1))

    kernel = functools.partial(_fused_bert_kernel, B=B, S=S)
    out_flat = pl.pallas_call(
        kernel,
        out_shape=jax.ShapeDtypeStruct((BS, HIDDEN), jnp.float32),
    )(ids2, seg2, input_mask,
      params["word_emb"], params["type_emb"], pe,
      params["emb_ln_g"], params["emb_ln_b"],
      *params["layer_stack"])
    return out_flat.reshape(B, S, HIDDEN)                         # last hidden states (B, S, H)


if __name__ == "__main__":
    B, S = 2, 8
    key = jax.random.PRNGKey(0)
    pkey, ikey, skey = jax.random.split(key, 3)

    params = init_params(pkey)

    ids = jax.random.randint(ikey, (B, S), 0, VOCAB)
    lens = jnp.array([S, S - 3])
    mask = (jnp.arange(S)[None, :] < lens[:, None]).astype(jnp.float32)
    seg = jax.random.randint(skey, (B, S), 0, TYPE_VOCAB)

    # text: (batch, 3, seq_len) with [input_ids, input_mask, segment_ids]
    text = jnp.stack(
        [ids.astype(jnp.float32), mask, seg.astype(jnp.float32)], axis=1
    )

    out = bert_text_encoder_forward(params, text)
    out = jax.block_until_ready(out)
    assert out.shape == (B, S, HIDDEN)
    assert out.dtype == jnp.float32
    assert bool(jnp.all(jnp.isfinite(out)))
    print("KERNEL_OK")
</pallas_src>

<mosaic_0001>
module attributes {stable_mosaic.version = 11 : i64} {
  func.func @_fused_bert_kernel(%arg0: memref<16x1xi32, #tpu.memory_space<vmem>>, %arg1: memref<16x1xi32, #tpu.memory_space<vmem>>, %arg2: memref<2x8xf32, #tpu.memory_space<vmem>>, %arg3: memref<100x32xf32, #tpu.memory_space<vmem>>, %arg4: memref<2x32xf32, #tpu.memory_space<vmem>>, %arg5: memref<16x32xf32, #tpu.memory_space<vmem>>, %arg6: memref<1x32xf32, #tpu.memory_space<vmem>>, %arg7: memref<1x32xf32, #tpu.memory_space<vmem>>, %arg8: memref<2x32x32xbf16, #tpu.memory_space<vmem>>, %arg9: memref<2x1x32xf32, #tpu.memory_space<vmem>>, %arg10: memref<2x32x32xbf16, #tpu.memory_space<vmem>>, %arg11: memref<2x1x32xf32, #tpu.memory_space<vmem>>, %arg12: memref<2x32x32xbf16, #tpu.memory_space<vmem>>, %arg13: memref<2x1x32xf32, #tpu.memory_space<vmem>>, %arg14: memref<2x32x32xbf16, #tpu.memory_space<vmem>>, %arg15: memref<2x1x32xf32, #tpu.memory_space<vmem>>, %arg16: memref<2x1x32xf32, #tpu.memory_space<vmem>>, %arg17: memref<2x1x32xf32, #tpu.memory_space<vmem>>, %arg18: memref<2x32x64xbf16, #tpu.memory_space<vmem>>, %arg19: memref<2x1x64xf32, #tpu.memory_space<vmem>>, %arg20: memref<2x64x32xbf16, #tpu.memory_space<vmem>>, %arg21: memref<2x1x32xf32, #tpu.memory_space<vmem>>, %arg22: memref<2x1x32xf32, #tpu.memory_space<vmem>>, %arg23: memref<2x1x32xf32, #tpu.memory_space<vmem>>, %arg24: memref<16x32xf32, #tpu.memory_space<vmem>>) attributes {dimension_semantics = [], scalar_prefetch = 0 : i64, scratch_operands = 0 : i64, tpu.core_type = #tpu.core_type<tc>} {
    %c0 = arith.constant 0 : index
    %c0_0 = arith.constant 0 : index
    %0 = vector.load %arg0[%c0, %c0_0] : memref<16x1xi32, #tpu.memory_space<vmem>>, vector<16x1xi32>
    %c0_1 = arith.constant 0 : index
    %c0_2 = arith.constant 0 : index
    %1 = vector.load %arg1[%c0_1, %c0_2] : memref<16x1xi32, #tpu.memory_space<vmem>>, vector<16x1xi32>
    %2 = tpu.iota {dimensions = array<i32: 1>} : vector<16x100xi32>
    %3 = vector.broadcast %0 : vector<16x1xi32> to vector<16x100xi32>
    %4 = arith.cmpi eq, %3, %2 : vector<16x100xi32>
    %5 = arith.extui %4 : vector<16x100xi1> to vector<16x100xi32>
    %6 = arith.sitofp %5 : vector<16x100xi32> to vector<16x100xf32>
    %7 = tpu.iota {dimensions = array<i32: 1>} : vector<16x2xi32>
    %8 = vector.broadcast %1 : vector<16x1xi32> to vector<16x2xi32>
    %9 = arith.cmpi eq, %8, %7 : vector<16x2xi32>
    %10 = arith.extui %9 : vector<16x2xi1> to vector<16x2xi32>
    %11 = arith.sitofp %10 : vector<16x2xi32> to vector<16x2xf32>
    %c0_3 = arith.constant 0 : index
    %c0_4 = arith.constant 0 : index
    %12 = vector.load %arg3[%c0_3, %c0_4] : memref<100x32xf32, #tpu.memory_space<vmem>>, vector<100x32xf32>
    %cst = arith.constant dense<0.000000e+00> : vector<16x32xf32>
    %13 = tpu.matmul %6, %12, %cst {dimension_numbers = #tpu.dot_dimension_numbers<[1], [0], [0], [1], [0, 0, 1, 1], [], []>} : vector<16x100xf32>, vector<100x32xf32>, vector<16x32xf32> -> vector<16x32xf32>
    %c0_5 = arith.constant 0 : index
    %c0_6 = arith.constant 0 : index
    %14 = vector.load %arg4[%c0_5, %c0_6] : memref<2x32xf32, #tpu.memory_space<vmem>>, vector<2x32xf32>
    %cst_7 = arith.constant dense<0.000000e+00> : vector<16x32xf32>
    %15 = tpu.matmul %11, %14, %cst_7 {dimension_numbers = #tpu.dot_dimension_numbers<[1], [0], [0], [1], [0, 0, 1, 1], [], []>} : vector<16x2xf32>, vector<2x32xf32>, vector<16x32xf32> -> vector<16x32xf32>
    %c0_8 = arith.constant 0 : index
    %c0_9 = arith.constant 0 : index
    %16 = vector.load %arg5[%c0_8, %c0_9] : memref<16x32xf32, #tpu.memory_space<vmem>>, vector<16x32xf32>
    %17 = arith.addf %13, %16 : vector<16x32xf32>
    %18 = arith.addf %17, %15 : vector<16x32xf32>
    %c0_10 = arith.constant 0 : index
    %c0_11 = arith.constant 0 : index
    %19 = vector.load %arg6[%c0_10, %c0_11] : memref<1x32xf32, #tpu.memory_space<vmem>>, vector<1x32xf32>
    %c0_12 = arith.constant 0 : index
    %c0_13 = arith.constant 0 : index
    %20 = vector.load %arg7[%c0_12, %c0_13] : memref<1x32xf32, #tpu.memory_space<vmem>>, vector<1x32xf32>
    %cst_14 = arith.constant dense<0.000000e+00> : vector<16xf32>
    %21 = vector.multi_reduction <add>, %18, %cst_14 [1] : vector<16x32xf32> to vector<16xf32>
    %22 = vector.shape_cast %21 : vector<16xf32> to vector<16x1xf32>
    %cst_15 = arith.constant 3.200000e+01 : f32
    %23 = vector.broadcast %cst_15 : f32 to vector<16x1xf32>
    %24 = arith.divf %22, %23 : vector<16x1xf32>
    %25 = vector.broadcast %24 : vector<16x1xf32> to vector<16x32xf32>
    %26 = arith.subf %18, %25 : vector<16x32xf32>
    %27 = arith.mulf %26, %26 : vector<16x32xf32>
    %cst_16 = arith.constant dense<0.000000e+00> : vector<16xf32>
    %28 = vector.multi_reduction <add>, %27, %cst_16 [1] : vector<16x32xf32> to vector<16xf32>
    %29 = vector.shape_cast %28 : vector<16xf32> to vector<16x1xf32>
    %cst_17 = arith.constant 3.200000e+01 : f32
    %30 = vector.broadcast %cst_17 : f32 to vector<16x1xf32>
    %31 = arith.divf %29, %30 : vector<16x1xf32>
    %32 = vector.broadcast %24 : vector<16x1xf32> to vector<16x32xf32>
    %33 = arith.subf %18, %32 : vector<16x32xf32>
    %cst_18 = arith.constant 9.99999996E-13 : f32
    %34 = vector.broadcast %cst_18 : f32 to vector<16x1xf32>
    %35 = arith.addf %31, %34 : vector<16x1xf32>
    %36 = math.rsqrt %35 : vector<16x1xf32>
    %37 = vector.broadcast %36 : vector<16x1xf32> to vector<16x32xf32>
    %38 = arith.mulf %33, %37 : vector<16x32xf32>
    %39 = vector.broadcast %19 : vector<1x32xf32> to vector<16x32xf32>
    %40 = arith.mulf %38, %39 : vector<16x32xf32>
    %41 = vector.broadcast %20 : vector<1x32xf32> to vector<16x32xf32>
    %42 = arith.addf %40, %41 : vector<16x32xf32>
    %c0_19 = arith.constant 0 : index
    %c0_20 = arith.constant 0 : index
    %43 = vector.load %arg2[%c0_19, %c0_20] : memref<2x8xf32, #tpu.memory_space<vmem>>, vector<2x8xf32>
    %cst_21 = arith.constant 1.000000e+00 : f32
    %44 = vector.broadcast %cst_21 : f32 to vector<2x8xf32>
    %45 = arith.subf %44, %43 : vector<2x8xf32>
    %cst_22 = arith.constant -1.000000e+04 : f32
    %46 = vector.broadcast %cst_22 : f32 to vector<2x8xf32>
    %47 = arith.mulf %45, %46 : vector<2x8xf32>
    %48 = arith.truncf %42 : vector<16x32xf32> to vector<16x32xbf16>
    %c0_23 = arith.constant 0 : index
    %c0_24 = arith.constant 0 : index
    %c0_25 = arith.constant 0 : index
    %49 = vector.load %arg8[%c0_23, %c0_24, %c0_25] : memref<2x32x32xbf16, #tpu.memory_space<vmem>>, vector<1x32x32xbf16>
    %50 = vector.shape_cast %49 : vector<1x32x32xbf16> to vector<32x32xbf16>
    %cst_26 = arith.constant dense<0.000000e+00> : vector<16x32xf32>
    %51 = tpu.matmul %48, %50, %cst_26 {dimension_numbers = #tpu.dot_dimension_numbers<[1], [0], [0], [1], [0, 0, 1, 1], [], []>} : vector<16x32xbf16>, vector<32x32xbf16>, vector<16x32xf32> -> vector<16x32xf32>
    %c0_27 = arith.constant 0 : index
    %c0_28 = arith.constant 0 : index
    %c0_29 = arith.constant 0 : index
    %52 = vector.load %arg9[%c0_27, %c0_28, %c0_29] : memref<2x1x32xf32, #tpu.memory_space<vmem>>, vector<1x1x32xf32>
    %53 = vector.shape_cast %52 : vector<1x1x32xf32> to vector<1x32xf32>
    %54 = vector.broadcast %53 : vector<1x32xf32> to vector<16x32xf32>
    %55 = arith.addf %51, %54 : vector<16x32xf32>
    %c0_30 = arith.constant 0 : index
    %c0_31 = arith.constant 0 : index
    %c0_32 = arith.constant 0 : index
    %56 = vector.load %arg10[%c0_30, %c0_31, %c0_32] : memref<2x32x32xbf16, #tpu.memory_space<vmem>>, vector<1x32x32xbf16>
    %57 = vector.shape_cast %56 : vector<1x32x32xbf16> to vector<32x32xbf16>
    %cst_33 = arith.constant dense<0.000000e+00> : vector<16x32xf32>
    %58 = tpu.matmul %48, %57, %cst_33 {dimension_numbers = #tpu.dot_dimension_numbers<[1], [0], [0], [1], [0, 0, 1, 1], [], []>} : vector<16x32xbf16>, vector<32x32xbf16>, vector<16x32xf32> -> vector<16x32xf32>
    %c0_34 = arith.constant 0 : index
    %c0_35 = arith.constant 0 : index
    %c0_36 = arith.constant 0 : index
    %59 = vector.load %arg11[%c0_34, %c0_35, %c0_36] : memref<2x1x32xf32, #tpu.memory_space<vmem>>, vector<1x1x32xf32>
    %60 = vector.shape_cast %59 : vector<1x1x32xf32> to vector<1x32xf32>
    %61 = vector.broadcast %60 : vector<1x32xf32> to vector<16x32xf32>
    %62 = arith.addf %58, %61 : vector<16x32xf32>
    %c0_37 = arith.constant 0 : index
    %c0_38 = arith.constant 0 : index
    %c0_39 = arith.constant 0 : index
    %63 = vector.load %arg12[%c0_37, %c0_38, %c0_39] : memref<2x32x32xbf16, #tpu.memory_space<vmem>>, vector<1x32x32xbf16>
    %64 = vector.shape_cast %63 : vector<1x32x32xbf16> to vector<32x32xbf16>
    %cst_40 = arith.constant dense<0.000000e+00> : vector<16x32xf32>
    %65 = tpu.matmul %48, %64, %cst_40 {dimension_numbers = #tpu.dot_dimension_numbers<[1], [0], [0], [1], [0, 0, 1, 1], [], []>} : vector<16x32xbf16>, vector<32x32xbf16>, vector<16x32xf32> -> vector<16x32xf32>
    %c0_41 = arith.constant 0 : index
    %c0_42 = arith.constant 0 : index
    %c0_43 = arith.constant 0 : index
    %66 = vector.load %arg13[%c0_41, %c0_42, %c0_43] : memref<2x1x32xf32, #tpu.memory_space<vmem>>, vector<1x1x32xf32>
    %67 = vector.shape_cast %66 : vector<1x1x32xf32> to vector<1x32xf32>
    %68 = vector.broadcast %67 : vector<1x32xf32> to vector<16x32xf32>
    %69 = arith.addf %65, %68 : vector<16x32xf32>
    %70 = vector.extract_strided_slice %47 {offsets = [0, 0], sizes = [1, 8], strides = [1, 1]} : vector<2x8xf32> to vector<1x8xf32>
    %71 = vector.extract_strided_slice %55 {offsets = [0, 0], sizes = [8, 16], strides = [1, 1]} : vector<16x32xf32> to vector<8x16xf32>
    %72 = vector.extract_strided_slice %62 {offsets = [0, 0], sizes = [8, 16], strides = [1, 1]} : vector<16x32xf32> to vector<8x16xf32>
    %73 = vector.extract_strided_slice %69 {offsets = [0, 0], sizes = [8, 16], strides = [1, 1]} : vector<16x32xf32> to vector<8x16xf32>
    %cst_44 = arith.constant dense<0.000000e+00> : vector<8x8xf32>
    %74 = tpu.matmul %71, %72, %cst_44 {dimension_numbers = #tpu.dot_dimension_numbers<[1], [1], [0], [0], [0, 0, 1, 0], [], []>} : vector<8x16xf32>, vector<8x16xf32>, vector<8x8xf32> -> vector<8x8xf32>
    %cst_45 = arith.constant 2.500000e-01 : f32
    %75 = vector.broadcast %cst_45 : f32 to vector<8x8xf32>
    %76 = arith.mulf %74, %75 : vector<8x8xf32>
    %77 = vector.broadcast %70 : vector<1x8xf32> to vector<8x8xf32>
    %78 = arith.addf %76, %77 : vector<8x8xf32>
    %cst_46 = arith.constant dense<0xFF800000> : vector<8xf32>
    %79 = vector.multi_reduction <maximumf>, %78, %cst_46 [1] : vector<8x8xf32> to vector<8xf32>
    %80 = vector.shape_cast %79 : vector<8xf32> to vector<8x1xf32>
    %81 = vector.broadcast %80 : vector<8x1xf32> to vector<8x8xf32>
    %82 = arith.subf %78, %81 : vector<8x8xf32>
    %83 = math.exp %82 : vector<8x8xf32>
    %cst_47 = arith.constant dense<0.000000e+00> : vector<8xf32>
    %84 = vector.multi_reduction <add>, %83, %cst_47 [1] : vector<8x8xf32> to vector<8xf32>
    %85 = vector.shape_cast %84 : vector<8xf32> to vector<8x1xf32>
    %86 = tpu.reciprocal %85 {approx = true} : vector<8x1xf32> -> vector<8x1xf32>
    %87 = vector.broadcast %86 : vector<8x1xf32> to vector<8x8xf32>
    %88 = arith.mulf %83, %87 : vector<8x8xf32>
    %cst_48 = arith.constant dense<0.000000e+00> : vector<8x16xf32>
    %89 = tpu.matmul %88, %73, %cst_48 {dimension_numbers = #tpu.dot_dimension_numbers<[1], [0], [0], [1], [0, 0, 1, 1], [], []>} : vector<8x8xf32>, vector<8x16xf32>, vector<8x16xf32> -> vector<8x16xf32>
    %90 = vector.extract_strided_slice %55 {offsets = [0, 16], sizes = [8, 16], strides = [1, 1]} : vector<16x32xf32> to vector<8x16xf32>
    %91 = vector.extract_strided_slice %62 {offsets = [0, 16], sizes = [8, 16], strides = [1, 1]} : vector<16x32xf32> to vector<8x16xf32>
    %92 = vector.extract_strided_slice %69 {offsets = [0, 16], sizes = [8, 16], strides = [1, 1]} : vector<16x32xf32> to vector<8x16xf32>
    %cst_49 = arith.constant dense<0.000000e+00> : vector<8x8xf32>
    %93 = tpu.matmul %90, %91, %cst_49 {dimension_numbers = #tpu.dot_dimension_numbers<[1], [1], [0], [0], [0, 0, 1, 0], [], []>} : vector<8x16xf32>, vector<8x16xf32>, vector<8x8xf32> -> vector<8x8xf32>
    %cst_50 = arith.constant 2.500000e-01 : f32
    %94 = vector.broadcast %cst_50 : f32 to vector<8x8xf32>
    %95 = arith.mulf %93, %94 : vector<8x8xf32>
    %96 = vector.broadcast %70 : vector<1x8xf32> to vector<8x8xf32>
    %97 = arith.addf %95, %96 : vector<8x8xf32>
    %cst_51 = arith.constant dense<0xFF800000> : vector<8xf32>
    %98 = vector.multi_reduction <maximumf>, %97, %cst_51 [1] : vector<8x8xf32> to vector<8xf32>
    %99 = vector.shape_cast %98 : vector<8xf32> to vector<8x1xf32>
    %100 = vector.broadcast %99 : vector<8x1xf32> to vector<8x8xf32>
    %101 = arith.subf %97, %100 : vector<8x8xf32>
    %102 = math.exp %101 : vector<8x8xf32>
    %cst_52 = arith.constant dense<0.000000e+00> : vector<8xf32>
    %103 = vector.multi_reduction <add>, %102, %cst_52 [1] : vector<8x8xf32> to vector<8xf32>
    %104 = vector.shape_cast %103 : vector<8xf32> to vector<8x1xf32>
    %105 = tpu.reciprocal %104 {approx = true} : vector<8x1xf32> -> vector<8x1xf32>
    %106 = vector.broadcast %105 : vector<8x1xf32> to vector<8x8xf32>
    %107 = arith.mulf %102, %106 : vector<8x8xf32>
    %cst_53 = arith.constant dense<0.000000e+00> : vector<8x16xf32>
    %108 = tpu.matmul %107, %92, %cst_53 {dimension_numbers = #tpu.dot_dimension_numbers<[1], [0], [0], [1], [0, 0, 1, 1], [], []>} : vector<8x8xf32>, vector<8x16xf32>, vector<8x16xf32> -> vector<8x16xf32>
    %109 = tpu.concatenate %89, %108 in 1 : vector<8x16xf32>, vector<8x16xf32> -> vector<8x32xf32>
    %110 = vector.extract_strided_slice %47 {offsets = [1, 0], sizes = [1, 8], strides = [1, 1]} : vector<2x8xf32> to vector<1x8xf32>
    %111 = vector.extract_strided_slice %55 {offsets = [8, 0], sizes = [8, 16], strides = [1, 1]} : vector<16x32xf32> to vector<8x16xf32>
    %112 = vector.extract_strided_slice %62 {offsets = [8, 0], sizes = [8, 16], strides = [1, 1]} : vector<16x32xf32> to vector<8x16xf32>
    %113 = vector.extract_strided_slice %69 {offsets = [8, 0], sizes = [8, 16], strides = [1, 1]} : vector<16x32xf32> to vector<8x16xf32>
    %cst_54 = arith.constant dense<0.000000e+00> : vector<8x8xf32>
    %114 = tpu.matmul %111, %112, %cst_54 {dimension_numbers = #tpu.dot_dimension_numbers<[1], [1], [0], [0], [0, 0, 1, 0], [], []>} : vector<8x16xf32>, vector<8x16xf32>, vector<8x8xf32> -> vector<8x8xf32>
    %cst_55 = arith.constant 2.500000e-01 : f32
    %115 = vector.broadcast %cst_55 : f32 to vector<8x8xf32>
    %116 = arith.mulf %114, %115 : vector<8x8xf32>
    %117 = vector.broadcast %110 : vector<1x8xf32> to vector<8x8xf32>
    %118 = arith.addf %116, %117 : vector<8x8xf32>
    %cst_56 = arith.constant dense<0xFF800000> : vector<8xf32>
    %119 = vector.multi_reduction <maximumf>, %118, %cst_56 [1] : vector<8x8xf32> to vector<8xf32>
    %120 = vector.shape_cast %119 : vector<8xf32> to vector<8x1xf32>
    %121 = vector.broadcast %120 : vector<8x1xf32> to vector<8x8xf32>
    %122 = arith.subf %118, %121 : vector<8x8xf32>
    %123 = math.exp %122 : vector<8x8xf32>
    %cst_57 = arith.constant dense<0.000000e+00> : vector<8xf32>
    %124 = vector.multi_reduction <add>, %123, %cst_57 [1] : vector<8x8xf32> to vector<8xf32>
    %125 = vector.shape_cast %124 : vector<8xf32> to vector<8x1xf32>
    %126 = tpu.reciprocal %125 {approx = true} : vector<8x1xf32> -> vector<8x1xf32>
    %127 = vector.broadcast %126 : vector<8x1xf32> to vector<8x8xf32>
    %128 = arith.mulf %123, %127 : vector<8x8xf32>
    %cst_58 = arith.constant dense<0.000000e+00> : vector<8x16xf32>
    %129 = tpu.matmul %128, %113, %cst_58 {dimension_numbers = #tpu.dot_dimension_numbers<[1], [0], [0], [1], [0, 0, 1, 1], [], []>} : vector<8x8xf32>, vector<8x16xf32>, vector<8x16xf32> -> vector<8x16xf32>
    %130 = vector.extract_strided_slice %55 {offsets = [8, 16], sizes = [8, 16], strides = [1, 1]} : vector<16x32xf32> to vector<8x16xf32>
    %131 = vector.extract_strided_slice %62 {offsets = [8, 16], sizes = [8, 16], strides = [1, 1]} : vector<16x32xf32> to vector<8x16xf32>
    %132 = vector.extract_strided_slice %69 {offsets = [8, 16], sizes = [8, 16], strides = [1, 1]} : vector<16x32xf32> to vector<8x16xf32>
    %cst_59 = arith.constant dense<0.000000e+00> : vector<8x8xf32>
    %133 = tpu.matmul %130, %131, %cst_59 {dimension_numbers = #tpu.dot_dimension_numbers<[1], [1], [0], [0], [0, 0, 1, 0], [], []>} : vector<8x16xf32>, vector<8x16xf32>, vector<8x8xf32> -> vector<8x8xf32>
    %cst_60 = arith.constant 2.500000e-01 : f32
    %134 = vector.broadcast %cst_60 : f32 to vector<8x8xf32>
    %135 = arith.mulf %133, %134 : vector<8x8xf32>
    %136 = vector.broadcast %110 : vector<1x8xf32> to vector<8x8xf32>
    %137 = arith.addf %135, %136 : vector<8x8xf32>
    %cst_61 = arith.constant dense<0xFF800000> : vector<8xf32>
    %138 = vector.multi_reduction <maximumf>, %137, %cst_61 [1] : vector<8x8xf32> to vector<8xf32>
    %139 = vector.shape_cast %138 : vector<8xf32> to vector<8x1xf32>
    %140 = vector.broadcast %139 : vector<8x1xf32> to vector<8x8xf32>
    %141 = arith.subf %137, %140 : vector<8x8xf32>
    %142 = math.exp %141 : vector<8x8xf32>
    %cst_62 = arith.constant dense<0.000000e+00> : vector<8xf32>
    %143 = vector.multi_reduction <add>, %142, %cst_62 [1] : vector<8x8xf32> to vector<8xf32>
    %144 = vector.shape_cast %143 : vector<8xf32> to vector<8x1xf32>
    %145 = tpu.reciprocal %144 {approx = true} : vector<8x1xf32> -> vector<8x1xf32>
    %146 = vector.broadcast %145 : vector<8x1xf32> to vector<8x8xf32>
    %147 = arith.mulf %142, %146 : vector<8x8xf32>
    %cst_63 = arith.constant dense<0.000000e+00> : vector<8x16xf32>
    %148 = tpu.matmul %147, %132, %cst_63 {dimension_numbers = #tpu.dot_dimension_numbers<[1], [0], [0], [1], [0, 0, 1, 1], [], []>} : vector<8x8xf32>, vector<8x16xf32>, vector<8x16xf32> -> vector<8x16xf32>
    %149 = tpu.concatenate %129, %148 in 1 : vector<8x16xf32>, vector<8x16xf32> -> vector<8x32xf32>
    %150 = tpu.concatenate %109, %149 in 0 : vector<8x32xf32>, vector<8x32xf32> -> vector<16x32xf32>
    %151 = arith.truncf %150 : vector<16x32xf32> to vector<16x32xbf16>
    %c0_64 = arith.constant 0 : index
    %c0_65 = arith.constant 0 : index
    %c0_66 = arith.constant 0 : index
    %152 = vector.load %arg14[%c0_64, %c0_65, %c0_66] : memref<2x32x32xbf16, #tpu.memory_space<vmem>>, vector<1x32x32xbf16>
    %153 = vector.shape_cast %152 : vector<1x32x32xbf16> to vector<32x32xbf16>
    %cst_67 = arith.constant dense<0.000000e+00> : vector<16x32xf32>
    %154 = tpu.matmul %151, %153, %cst_67 {dimension_numbers = #tpu.dot_dimension_numbers<[1], [0], [0], [1], [0, 0, 1, 1], [], []>} : vector<16x32xbf16>, vector<32x32xbf16>, vector<16x32xf32> -> vector<16x32xf32>
    %c0_68 = arith.constant 0 : index
    %c0_69 = arith.constant 0 : index
    %c0_70 = arith.constant 0 : index
    %155 = vector.load %arg15[%c0_68, %c0_69, %c0_70] : memref<2x1x32xf32, #tpu.memory_space<vmem>>, vector<1x1x32xf32>
    %156 = vector.shape_cast %155 : vector<1x1x32xf32> to vector<1x32xf32>
    %157 = vector.broadcast %156 : vector<1x32xf32> to vector<16x32xf32>
    %158 = arith.addf %154, %157 : vector<16x32xf32>
    %159 = arith.addf %158, %42 : vector<16x32xf32>
    %c0_71 = arith.constant 0 : index
    %c0_72 = arith.constant 0 : index
    %c0_73 = arith.constant 0 : index
    %160 = vector.load %arg16[%c0_71, %c0_72, %c0_73] : memref<2x1x32xf32, #tpu.memory_space<vmem>>, vector<1x1x32xf32>
    %161 = vector.shape_cast %160 : vector<1x1x32xf32> to vector<1x32xf32>
    %c0_74 = arith.constant 0 : index
    %c0_75 = arith.constant 0 : index
    %c0_76 = arith.constant 0 : index
    %162 = vector.load %arg17[%c0_74, %c0_75, %c0_76] : memref<2x1x32xf32, #tpu.memory_space<vmem>>, vector<1x1x32xf32>
    %163 = vector.shape_cast %162 : vector<1x1x32xf32> to vector<1x32xf32>
    %cst_77 = arith.constant dense<0.000000e+00> : vector<16xf32>
    %164 = vector.multi_reduction <add>, %159, %cst_77 [1] : vector<16x32xf32> to vector<16xf32>
    %165 = vector.shape_cast %164 : vector<16xf32> to vector<16x1xf32>
    %cst_78 = arith.constant 3.200000e+01 : f32
    %166 = vector.broadcast %cst_78 : f32 to vector<16x1xf32>
    %167 = arith.divf %165, %166 : vector<16x1xf32>
    %168 = vector.broadcast %167 : vector<16x1xf32> to vector<16x32xf32>
    %169 = arith.subf %159, %168 : vector<16x32xf32>
    %170 = arith.mulf %169, %169 : vector<16x32xf32>
    %cst_79 = arith.constant dense<0.000000e+00> : vector<16xf32>
    %171 = vector.multi_reduction <add>, %170, %cst_79 [1] : vector<16x32xf32> to vector<16xf32>
    %172 = vector.shape_cast %171 : vector<16xf32> to vector<16x1xf32>
    %cst_80 = arith.constant 3.200000e+01 : f32
    %173 = vector.broadcast %cst_80 : f32 to vector<16x1xf32>
    %174 = arith.divf %172, %173 : vector<16x1xf32>
    %175 = vector.broadcast %167 : vector<16x1xf32> to vector<16x32xf32>
    %176 = arith.subf %159, %175 : vector<16x32xf32>
    %cst_81 = arith.constant 9.99999996E-13 : f32
    %177 = vector.broadcast %cst_81 : f32 to vector<16x1xf32>
    %178 = arith.addf %174, %177 : vector<16x1xf32>
    %179 = math.rsqrt %178 : vector<16x1xf32>
    %180 = vector.broadcast %179 : vector<16x1xf32> to vector<16x32xf32>
    %181 = arith.mulf %176, %180 : vector<16x32xf32>
    %182 = vector.broadcast %161 : vector<1x32xf32> to vector<16x32xf32>
    %183 = arith.mulf %181, %182 : vector<16x32xf32>
    %184 = vector.broadcast %163 : vector<1x32xf32> to vector<16x32xf32>
    %185 = arith.addf %183, %184 : vector<16x32xf32>
    %186 = arith.truncf %185 : vector<16x32xf32> to vector<16x32xbf16>
    %c0_82 = arith.constant 0 : index
    %c0_83 = arith.constant 0 : index
    %c0_84 = arith.constant 0 : index
    %187 = vector.load %arg18[%c0_82, %c0_83, %c0_84] : memref<2x32x64xbf16, #tpu.memory_space<vmem>>, vector<1x32x64xbf16>
    %188 = vector.shape_cast %187 : vector<1x32x64xbf16> to vector<32x64xbf16>
    %cst_85 = arith.constant dense<0.000000e+00> : vector<16x64xf32>
    %189 = tpu.matmul %186, %188, %cst_85 {dimension_numbers = #tpu.dot_dimension_numbers<[1], [0], [0], [1], [0, 0, 1, 1], [], []>} : vector<16x32xbf16>, vector<32x64xbf16>, vector<16x64xf32> -> vector<16x64xf32>
    %c0_86 = arith.constant 0 : index
    %c0_87 = arith.constant 0 : index
    %c0_88 = arith.constant 0 : index
    %190 = vector.load %arg19[%c0_86, %c0_87, %c0_88] : memref<2x1x64xf32, #tpu.memory_space<vmem>>, vector<1x1x64xf32>
    %191 = vector.shape_cast %190 : vector<1x1x64xf32> to vector<1x64xf32>
    %192 = vector.broadcast %191 : vector<1x64xf32> to vector<16x64xf32>
    %193 = arith.addf %189, %192 : vector<16x64xf32>
    %cst_89 = arith.constant 5.000000e-01 : f32
    %194 = vector.broadcast %cst_89 : f32 to vector<16x64xf32>
    %195 = arith.mulf %194, %193 : vector<16x64xf32>
    %cst_90 = arith.constant 4.471500e-02 : f32
    %196 = vector.broadcast %cst_90 : f32 to vector<16x64xf32>
    %197 = arith.mulf %196, %193 : vector<16x64xf32>
    %198 = arith.mulf %197, %193 : vector<16x64xf32>
    %199 = arith.mulf %198, %193 : vector<16x64xf32>
    %200 = arith.addf %193, %199 : vector<16x64xf32>
    %cst_91 = arith.constant 0.797884583 : f32
    %201 = vector.broadcast %cst_91 : f32 to vector<16x64xf32>
    %202 = arith.mulf %201, %200 : vector<16x64xf32>
    %203 = math.tanh %202 : vector<16x64xf32>
    %cst_92 = arith.constant 1.000000e+00 : f32
    %204 = vector.broadcast %cst_92 : f32 to vector<16x64xf32>
    %205 = arith.addf %204, %203 : vector<16x64xf32>
    %206 = arith.mulf %195, %205 : vector<16x64xf32>
    %207 = arith.truncf %206 : vector<16x64xf32> to vector<16x64xbf16>
    %c0_93 = arith.constant 0 : index
    %c0_94 = arith.constant 0 : index
    %c0_95 = arith.constant 0 : index
    %208 = vector.load %arg20[%c0_93, %c0_94, %c0_95] : memref<2x64x32xbf16, #tpu.memory_space<vmem>>, vector<1x64x32xbf16>
    %209 = vector.shape_cast %208 : vector<1x64x32xbf16> to vector<64x32xbf16>
    %cst_96 = arith.constant dense<0.000000e+00> : vector<16x32xf32>
    %210 = tpu.matmul %207, %209, %cst_96 {dimension_numbers = #tpu.dot_dimension_numbers<[1], [0], [0], [1], [0, 0, 1, 1], [], []>} : vector<16x64xbf16>, vector<64x32xbf16>, vector<16x32xf32> -> vector<16x32xf32>
    %c0_97 = arith.constant 0 : index
    %c0_98 = arith.constant 0 : index
    %c0_99 = arith.constant 0 : index
    %211 = vector.load %arg21[%c0_97, %c0_98, %c0_99] : memref<2x1x32xf32, #tpu.memory_space<vmem>>, vector<1x1x32xf32>
    %212 = vector.shape_cast %211 : vector<1x1x32xf32> to vector<1x32xf32>
    %213 = vector.broadcast %212 : vector<1x32xf32> to vector<16x32xf32>
    %214 = arith.addf %210, %213 : vector<16x32xf32>
    %215 = arith.addf %214, %185 : vector<16x32xf32>
    %c0_100 = arith.constant 0 : index
    %c0_101 = arith.constant 0 : index
    %c0_102 = arith.constant 0 : index
    %216 = vector.load %arg22[%c0_100, %c0_101, %c0_102] : memref<2x1x32xf32, #tpu.memory_space<vmem>>, vector<1x1x32xf32>
    %217 = vector.shape_cast %216 : vector<1x1x32xf32> to vector<1x32xf32>
    %c0_103 = arith.constant 0 : index
    %c0_104 = arith.constant 0 : index
    %c0_105 = arith.constant 0 : index
    %218 = vector.load %arg23[%c0_103, %c0_104, %c0_105] : memref<2x1x32xf32, #tpu.memory_space<vmem>>, vector<1x1x32xf32>
    %219 = vector.shape_cast %218 : vector<1x1x32xf32> to vector<1x32xf32>
    %cst_106 = arith.constant dense<0.000000e+00> : vector<16xf32>
    %220 = vector.multi_reduction <add>, %215, %cst_106 [1] : vector<16x32xf32> to vector<16xf32>
    %221 = vector.shape_cast %220 : vector<16xf32> to vector<16x1xf32>
    %cst_107 = arith.constant 3.200000e+01 : f32
    %222 = vector.broadcast %cst_107 : f32 to vector<16x1xf32>
    %223 = arith.divf %221, %222 : vector<16x1xf32>
    %224 = vector.broadcast %223 : vector<16x1xf32> to vector<16x32xf32>
    %225 = arith.subf %215, %224 : vector<16x32xf32>
    %226 = arith.mulf %225, %225 : vector<16x32xf32>
    %cst_108 = arith.constant dense<0.000000e+00> : vector<16xf32>
    %227 = vector.multi_reduction <add>, %226, %cst_108 [1] : vector<16x32xf32> to vector<16xf32>
    %228 = vector.shape_cast %227 : vector<16xf32> to vector<16x1xf32>
    %cst_109 = arith.constant 3.200000e+01 : f32
    %229 = vector.broadcast %cst_109 : f32 to vector<16x1xf32>
    %230 = arith.divf %228, %229 : vector<16x1xf32>
    %231 = vector.broadcast %223 : vector<16x1xf32> to vector<16x32xf32>
    %232 = arith.subf %215, %231 : vector<16x32xf32>
    %cst_110 = arith.constant 9.99999996E-13 : f32
    %233 = vector.broadcast %cst_110 : f32 to vector<16x1xf32>
    %234 = arith.addf %230, %233 : vector<16x1xf32>
    %235 = math.rsqrt %234 : vector<16x1xf32>
    %236 = vector.broadcast %235 : vector<16x1xf32> to vector<16x32xf32>
    %237 = arith.mulf %232, %236 : vector<16x32xf32>
    %238 = vector.broadcast %217 : vector<1x32xf32> to vector<16x32xf32>
    %239 = arith.mulf %237, %238 : vector<16x32xf32>
    %240 = vector.broadcast %219 : vector<1x32xf32> to vector<16x32xf32>
    %241 = arith.addf %239, %240 : vector<16x32xf32>
    %242 = arith.truncf %241 : vector<16x32xf32> to vector<16x32xbf16>
    %c1 = arith.constant 1 : index
    %c0_111 = arith.constant 0 : index
    %c0_112 = arith.constant 0 : index
    %243 = vector.load %arg8[%c1, %c0_111, %c0_112] : memref<2x32x32xbf16, #tpu.memory_space<vmem>>, vector<1x32x32xbf16>
    %244 = vector.shape_cast %243 : vector<1x32x32xbf16> to vector<32x32xbf16>
    %cst_113 = arith.constant dense<0.000000e+00> : vector<16x32xf32>
    %245 = tpu.matmul %242, %244, %cst_113 {dimension_numbers = #tpu.dot_dimension_numbers<[1], [0], [0], [1], [0, 0, 1, 1], [], []>} : vector<16x32xbf16>, vector<32x32xbf16>, vector<16x32xf32> -> vector<16x32xf32>
    %c1_114 = arith.constant 1 : index
    %c0_115 = arith.constant 0 : index
    %c0_116 = arith.constant 0 : index
    %246 = vector.load %arg9[%c1_114, %c0_115, %c0_116] : memref<2x1x32xf32, #tpu.memory_space<vmem>>, vector<1x1x32xf32>
    %247 = vector.shape_cast %246 : vector<1x1x32xf32> to vector<1x32xf32>
    %248 = vector.broadcast %247 : vector<1x32xf32> to vector<16x32xf32>
    %249 = arith.addf %245, %248 : vector<16x32xf32>
    %c1_117 = arith.constant 1 : index
    %c0_118 = arith.constant 0 : index
    %c0_119 = arith.constant 0 : index
    %250 = vector.load %arg10[%c1_117, %c0_118, %c0_119] : memref<2x32x32xbf16, #tpu.memory_space<vmem>>, vector<1x32x32xbf16>
    %251 = vector.shape_cast %250 : vector<1x32x32xbf16> to vector<32x32xbf16>
    %cst_120 = arith.constant dense<0.000000e+00> : vector<16x32xf32>
    %252 = tpu.matmul %242, %251, %cst_120 {dimension_numbers = #tpu.dot_dimension_numbers<[1], [0], [0], [1], [0, 0, 1, 1], [], []>} : vector<16x32xbf16>, vector<32x32xbf16>, vector<16x32xf32> -> vector<16x32xf32>
    %c1_121 = arith.constant 1 : index
    %c0_122 = arith.constant 0 : index
    %c0_123 = arith.constant 0 : index
    %253 = vector.load %arg11[%c1_121, %c0_122, %c0_123] : memref<2x1x32xf32, #tpu.memory_space<vmem>>, vector<1x1x32xf32>
    %254 = vector.shape_cast %253 : vector<1x1x32xf32> to vector<1x32xf32>
    %255 = vector.broadcast %254 : vector<1x32xf32> to vector<16x32xf32>
    %256 = arith.addf %252, %255 : vector<16x32xf32>
    %c1_124 = arith.constant 1 : index
    %c0_125 = arith.constant 0 : index
    %c0_126 = arith.constant 0 : index
    %257 = vector.load %arg12[%c1_124, %c0_125, %c0_126] : memref<2x32x32xbf16, #tpu.memory_space<vmem>>, vector<1x32x32xbf16>
    %258 = vector.shape_cast %257 : vector<1x32x32xbf16> to vector<32x32xbf16>
    %cst_127 = arith.constant dense<0.000000e+00> : vector<16x32xf32>
    %259 = tpu.matmul %242, %258, %cst_127 {dimension_numbers = #tpu.dot_dimension_numbers<[1], [0], [0], [1], [0, 0, 1, 1], [], []>} : vector<16x32xbf16>, vector<32x32xbf16>, vector<16x32xf32> -> vector<16x32xf32>
    %c1_128 = arith.constant 1 : index
    %c0_129 = arith.constant 0 : index
    %c0_130 = arith.constant 0 : index
    %260 = vector.load %arg13[%c1_128, %c0_129, %c0_130] : memref<2x1x32xf32, #tpu.memory_space<vmem>>, vector<1x1x32xf32>
    %261 = vector.shape_cast %260 : vector<1x1x32xf32> to vector<1x32xf32>
    %262 = vector.broadcast %261 : vector<1x32xf32> to vector<16x32xf32>
    %263 = arith.addf %259, %262 : vector<16x32xf32>
    %264 = vector.extract_strided_slice %47 {offsets = [0, 0], sizes = [1, 8], strides = [1, 1]} : vector<2x8xf32> to vector<1x8xf32>
    %265 = vector.extract_strided_slice %249 {offsets = [0, 0], sizes = [8, 16], strides = [1, 1]} : vector<16x32xf32> to vector<8x16xf32>
    %266 = vector.extract_strided_slice %256 {offsets = [0, 0], sizes = [8, 16], strides = [1, 1]} : vector<16x32xf32> to vector<8x16xf32>
    %267 = vector.extract_strided_slice %263 {offsets = [0, 0], sizes = [8, 16], strides = [1, 1]} : vector<16x32xf32> to vector<8x16xf32>
    %cst_131 = arith.constant dense<0.000000e+00> : vector<8x8xf32>
    %268 = tpu.matmul %265, %266, %cst_131 {dimension_numbers = #tpu.dot_dimension_numbers<[1], [1], [0], [0], [0, 0, 1, 0], [], []>} : vector<8x16xf32>, vector<8x16xf32>, vector<8x8xf32> -> vector<8x8xf32>
    %cst_132 = arith.constant 2.500000e-01 : f32
    %269 = vector.broadcast %cst_132 : f32 to vector<8x8xf32>
    %270 = arith.mulf %268, %269 : vector<8x8xf32>
    %271 = vector.broadcast %264 : vector<1x8xf32> to vector<8x8xf32>
    %272 = arith.addf %270, %271 : vector<8x8xf32>
    %cst_133 = arith.constant dense<0xFF800000> : vector<8xf32>
    %273 = vector.multi_reduction <maximumf>, %272, %cst_133 [1] : vector<8x8xf32> to vector<8xf32>
    %274 = vector.shape_cast %273 : vector<8xf32> to vector<8x1xf32>
    %275 = vector.broadcast %274 : vector<8x1xf32> to vector<8x8xf32>
    %276 = arith.subf %272, %275 : vector<8x8xf32>
    %277 = math.exp %276 : vector<8x8xf32>
    %cst_134 = arith.constant dense<0.000000e+00> : vector<8xf32>
    %278 = vector.multi_reduction <add>, %277, %cst_134 [1] : vector<8x8xf32> to vector<8xf32>
    %279 = vector.shape_cast %278 : vector<8xf32> to vector<8x1xf32>
    %280 = tpu.reciprocal %279 {approx = true} : vector<8x1xf32> -> vector<8x1xf32>
    %281 = vector.broadcast %280 : vector<8x1xf32> to vector<8x8xf32>
    %282 = arith.mulf %277, %281 : vector<8x8xf32>
    %cst_135 = arith.constant dense<0.000000e+00> : vector<8x16xf32>
    %283 = tpu.matmul %282, %267, %cst_135 {dimension_numbers = #tpu.dot_dimension_numbers<[1], [0], [0], [1], [0, 0, 1, 1], [], []>} : vector<8x8xf32>, vector<8x16xf32>, vector<8x16xf32> -> vector<8x16xf32>
    %284 = vector.extract_strided_slice %249 {offsets = [0, 16], sizes = [8, 16], strides = [1, 1]} : vector<16x32xf32> to vector<8x16xf32>
    %285 = vector.extract_strided_slice %256 {offsets = [0, 16], sizes = [8, 16], strides = [1, 1]} : vector<16x32xf32> to vector<8x16xf32>
    %286 = vector.extract_strided_slice %263 {offsets = [0, 16], sizes = [8, 16], strides = [1, 1]} : vector<16x32xf32> to vector<8x16xf32>
    %cst_136 = arith.constant dense<0.000000e+00> : vector<8x8xf32>
    %287 = tpu.matmul %284, %285, %cst_136 {dimension_numbers = #tpu.dot_dimension_numbers<[1], [1], [0], [0], [0, 0, 1, 0], [], []>} : vector<8x16xf32>, vector<8x16xf32>, vector<8x8xf32> -> vector<8x8xf32>
    %cst_137 = arith.constant 2.500000e-01 : f32
    %288 = vector.broadcast %cst_137 : f32 to vector<8x8xf32>
    %289 = arith.mulf %287, %288 : vector<8x8xf32>
    %290 = vector.broadcast %264 : vector<1x8xf32> to vector<8x8xf32>
    %291 = arith.addf %289, %290 : vector<8x8xf32>
    %cst_138 = arith.constant dense<0xFF800000> : vector<8xf32>
    %292 = vector.multi_reduction <maximumf>, %291, %cst_138 [1] : vector<8x8xf32> to vector<8xf32>
    %293 = vector.shape_cast %292 : vector<8xf32> to vector<8x1xf32>
    %294 = vector.broadcast %293 : vector<8x1xf32> to vector<8x8xf32>
    %295 = arith.subf %291, %294 : vector<8x8xf32>
    %296 = math.exp %295 : vector<8x8xf32>
    %cst_139 = arith.constant dense<0.000000e+00> : vector<8xf32>
    %297 = vector.multi_reduction <add>, %296, %cst_139 [1] : vector<8x8xf32> to vector<8xf32>
    %298 = vector.shape_cast %297 : vector<8xf32> to vector<8x1xf32>
    %299 = tpu.reciprocal %298 {approx = true} : vector<8x1xf32> -> vector<8x1xf32>
    %300 = vector.broadcast %299 : vector<8x1xf32> to vector<8x8xf32>
    %301 = arith.mulf %296, %300 : vector<8x8xf32>
    %cst_140 = arith.constant dense<0.000000e+00> : vector<8x16xf32>
    %302 = tpu.matmul %301, %286, %cst_140 {dimension_numbers = #tpu.dot_dimension_numbers<[1], [0], [0], [1], [0, 0, 1, 1], [], []>} : vector<8x8xf32>, vector<8x16xf32>, vector<8x16xf32> -> vector<8x16xf32>
    %303 = tpu.concatenate %283, %302 in 1 : vector<8x16xf32>, vector<8x16xf32> -> vector<8x32xf32>
    %304 = vector.extract_strided_slice %47 {offsets = [1, 0], sizes = [1, 8], strides = [1, 1]} : vector<2x8xf32> to vector<1x8xf32>
    %305 = vector.extract_strided_slice %249 {offsets = [8, 0], sizes = [8, 16], strides = [1, 1]} : vector<16x32xf32> to vector<8x16xf32>
    %306 = vector.extract_strided_slice %256 {offsets = [8, 0], sizes = [8, 16], strides = [1, 1]} : vector<16x32xf32> to vector<8x16xf32>
    %307 = vector.extract_strided_slice %263 {offsets = [8, 0], sizes = [8, 16], strides = [1, 1]} : vector<16x32xf32> to vector<8x16xf32>
    %cst_141 = arith.constant dense<0.000000e+00> : vector<8x8xf32>
    %308 = tpu.matmul %305, %306, %cst_141 {dimension_numbers = #tpu.dot_dimension_numbers<[1], [1], [0], [0], [0, 0, 1, 0], [], []>} : vector<8x16xf32>, vector<8x16xf32>, vector<8x8xf32> -> vector<8x8xf32>
    %cst_142 = arith.constant 2.500000e-01 : f32
    %309 = vector.broadcast %cst_142 : f32 to vector<8x8xf32>
    %310 = arith.mulf %308, %309 : vector<8x8xf32>
    %311 = vector.broadcast %304 : vector<1x8xf32> to vector<8x8xf32>
    %312 = arith.addf %310, %311 : vector<8x8xf32>
    %cst_143 = arith.constant dense<0xFF800000> : vector<8xf32>
    %313 = vector.multi_reduction <maximumf>, %312, %cst_143 [1] : vector<8x8xf32> to vector<8xf32>
    %314 = vector.shape_cast %313 : vector<8xf32> to vector<8x1xf32>
    %315 = vector.broadcast %314 : vector<8x1xf32> to vector<8x8xf32>
    %316 = arith.subf %312, %315 : vector<8x8xf32>
    %317 = math.exp %316 : vector<8x8xf32>
    %cst_144 = arith.constant dense<0.000000e+00> : vector<8xf32>
    %318 = vector.multi_reduction <add>, %317, %cst_144 [1] : vector<8x8xf32> to vector<8xf32>
    %319 = vector.shape_cast %318 : vector<8xf32> to vector<8x1xf32>
    %320 = tpu.reciprocal %319 {approx = true} : vector<8x1xf32> -> vector<8x1xf32>
    %321 = vector.broadcast %320 : vector<8x1xf32> to vector<8x8xf32>
    %322 = arith.mulf %317, %321 : vector<8x8xf32>
    %cst_145 = arith.constant dense<0.000000e+00> : vector<8x16xf32>
    %323 = tpu.matmul %322, %307, %cst_145 {dimension_numbers = #tpu.dot_dimension_numbers<[1], [0], [0], [1], [0, 0, 1, 1], [], []>} : vector<8x8xf32>, vector<8x16xf32>, vector<8x16xf32> -> vector<8x16xf32>
    %324 = vector.extract_strided_slice %249 {offsets = [8, 16], sizes = [8, 16], strides = [1, 1]} : vector<16x32xf32> to vector<8x16xf32>
    %325 = vector.extract_strided_slice %256 {offsets = [8, 16], sizes = [8, 16], strides = [1, 1]} : vector<16x32xf32> to vector<8x16xf32>
    %326 = vector.extract_strided_slice %263 {offsets = [8, 16], sizes = [8, 16], strides = [1, 1]} : vector<16x32xf32> to vector<8x16xf32>
    %cst_146 = arith.constant dense<0.000000e+00> : vector<8x8xf32>
    %327 = tpu.matmul %324, %325, %cst_146 {dimension_numbers = #tpu.dot_dimension_numbers<[1], [1], [0], [0], [0, 0, 1, 0], [], []>} : vector<8x16xf32>, vector<8x16xf32>, vector<8x8xf32> -> vector<8x8xf32>
    %cst_147 = arith.constant 2.500000e-01 : f32
    %328 = vector.broadcast %cst_147 : f32 to vector<8x8xf32>
    %329 = arith.mulf %327, %328 : vector<8x8xf32>
    %330 = vector.broadcast %304 : vector<1x8xf32> to vector<8x8xf32>
    %331 = arith.addf %329, %330 : vector<8x8xf32>
    %cst_148 = arith.constant dense<0xFF800000> : vector<8xf32>
    %332 = vector.multi_reduction <maximumf>, %331, %cst_148 [1] : vector<8x8xf32> to vector<8xf32>
    %333 = vector.shape_cast %332 : vector<8xf32> to vector<8x1xf32>
    %334 = vector.broadcast %333 : vector<8x1xf32> to vector<8x8xf32>
    %335 = arith.subf %331, %334 : vector<8x8xf32>
    %336 = math.exp %335 : vector<8x8xf32>
    %cst_149 = arith.constant dense<0.000000e+00> : vector<8xf32>
    %337 = vector.multi_reduction <add>, %336, %cst_149 [1] : vector<8x8xf32> to vector<8xf32>
    %338 = vector.shape_cast %337 : vector<8xf32> to vector<8x1xf32>
    %339 = tpu.reciprocal %338 {approx = true} : vector<8x1xf32> -> vector<8x1xf32>
    %340 = vector.broadcast %339 : vector<8x1xf32> to vector<8x8xf32>
    %341 = arith.mulf %336, %340 : vector<8x8xf32>
    %cst_150 = arith.constant dense<0.000000e+00> : vector<8x16xf32>
    %342 = tpu.matmul %341, %326, %cst_150 {dimension_numbers = #tpu.dot_dimension_numbers<[1], [0], [0], [1], [0, 0, 1, 1], [], []>} : vector<8x8xf32>, vector<8x16xf32>, vector<8x16xf32> -> vector<8x16xf32>
    %343 = tpu.concatenate %323, %342 in 1 : vector<8x16xf32>, vector<8x16xf32> -> vector<8x32xf32>
    %344 = tpu.concatenate %303, %343 in 0 : vector<8x32xf32>, vector<8x32xf32> -> vector<16x32xf32>
    %345 = arith.truncf %344 : vector<16x32xf32> to vector<16x32xbf16>
    %c1_151 = arith.constant 1 : index
    %c0_152 = arith.constant 0 : index
    %c0_153 = arith.constant 0 : index
    %346 = vector.load %arg14[%c1_151, %c0_152, %c0_153] : memref<2x32x32xbf16, #tpu.memory_space<vmem>>, vector<1x32x32xbf16>
    %347 = vector.shape_cast %346 : vector<1x32x32xbf16> to vector<32x32xbf16>
    %cst_154 = arith.constant dense<0.000000e+00> : vector<16x32xf32>
    %348 = tpu.matmul %345, %347, %cst_154 {dimension_numbers = #tpu.dot_dimension_numbers<[1], [0], [0], [1], [0, 0, 1, 1], [], []>} : vector<16x32xbf16>, vector<32x32xbf16>, vector<16x32xf32> -> vector<16x32xf32>
    %c1_155 = arith.constant 1 : index
    %c0_156 = arith.constant 0 : index
    %c0_157 = arith.constant 0 : index
    %349 = vector.load %arg15[%c1_155, %c0_156, %c0_157] : memref<2x1x32xf32, #tpu.memory_space<vmem>>, vector<1x1x32xf32>
    %350 = vector.shape_cast %349 : vector<1x1x32xf32> to vector<1x32xf32>
    %351 = vector.broadcast %350 : vector<1x32xf32> to vector<16x32xf32>
    %352 = arith.addf %348, %351 : vector<16x32xf32>
    %353 = arith.addf %352, %241 : vector<16x32xf32>
    %c1_158 = arith.constant 1 : index
    %c0_159 = arith.constant 0 : index
    %c0_160 = arith.constant 0 : index
    %354 = vector.load %arg16[%c1_158, %c0_159, %c0_160] : memref<2x1x32xf32, #tpu.memory_space<vmem>>, vector<1x1x32xf32>
    %355 = vector.shape_cast %354 : vector<1x1x32xf32> to vector<1x32xf32>
    %c1_161 = arith.constant 1 : index
    %c0_162 = arith.constant 0 : index
    %c0_163 = arith.constant 0 : index
    %356 = vector.load %arg17[%c1_161, %c0_162, %c0_163] : memref<2x1x32xf32, #tpu.memory_space<vmem>>, vector<1x1x32xf32>
    %357 = vector.shape_cast %356 : vector<1x1x32xf32> to vector<1x32xf32>
    %cst_164 = arith.constant dense<0.000000e+00> : vector<16xf32>
    %358 = vector.multi_reduction <add>, %353, %cst_164 [1] : vector<16x32xf32> to vector<16xf32>
    %359 = vector.shape_cast %358 : vector<16xf32> to vector<16x1xf32>
    %cst_165 = arith.constant 3.200000e+01 : f32
    %360 = vector.broadcast %cst_165 : f32 to vector<16x1xf32>
    %361 = arith.divf %359, %360 : vector<16x1xf32>
    %362 = vector.broadcast %361 : vector<16x1xf32> to vector<16x32xf32>
    %363 = arith.subf %353, %362 : vector<16x32xf32>
    %364 = arith.mulf %363, %363 : vector<16x32xf32>
    %cst_166 = arith.constant dense<0.000000e+00> : vector<16xf32>
    %365 = vector.multi_reduction <add>, %364, %cst_166 [1] : vector<16x32xf32> to vector<16xf32>
    %366 = vector.shape_cast %365 : vector<16xf32> to vector<16x1xf32>
    %cst_167 = arith.constant 3.200000e+01 : f32
    %367 = vector.broadcast %cst_167 : f32 to vector<16x1xf32>
    %368 = arith.divf %366, %367 : vector<16x1xf32>
    %369 = vector.broadcast %361 : vector<16x1xf32> to vector<16x32xf32>
    %370 = arith.subf %353, %369 : vector<16x32xf32>
    %cst_168 = arith.constant 9.99999996E-13 : f32
    %371 = vector.broadcast %cst_168 : f32 to vector<16x1xf32>
    %372 = arith.addf %368, %371 : vector<16x1xf32>
    %373 = math.rsqrt %372 : vector<16x1xf32>
    %374 = vector.broadcast %373 : vector<16x1xf32> to vector<16x32xf32>
    %375 = arith.mulf %370, %374 : vector<16x32xf32>
    %376 = vector.broadcast %355 : vector<1x32xf32> to vector<16x32xf32>
    %377 = arith.mulf %375, %376 : vector<16x32xf32>
    %378 = vector.broadcast %357 : vector<1x32xf32> to vector<16x32xf32>
    %379 = arith.addf %377, %378 : vector<16x32xf32>
    %380 = arith.truncf %379 : vector<16x32xf32> to vector<16x32xbf16>
    %c1_169 = arith.constant 1 : index
    %c0_170 = arith.constant 0 : index
    %c0_171 = arith.constant 0 : index
    %381 = vector.load %arg18[%c1_169, %c0_170, %c0_171] : memref<2x32x64xbf16, #tpu.memory_space<vmem>>, vector<1x32x64xbf16>
    %382 = vector.shape_cast %381 : vector<1x32x64xbf16> to vector<32x64xbf16>
    %cst_172 = arith.constant dense<0.000000e+00> : vector<16x64xf32>
    %383 = tpu.matmul %380, %382, %cst_172 {dimension_numbers = #tpu.dot_dimension_numbers<[1], [0], [0], [1], [0, 0, 1, 1], [], []>} : vector<16x32xbf16>, vector<32x64xbf16>, vector<16x64xf32> -> vector<16x64xf32>
    %c1_173 = arith.constant 1 : index
    %c0_174 = arith.constant 0 : index
    %c0_175 = arith.constant 0 : index
    %384 = vector.load %arg19[%c1_173, %c0_174, %c0_175] : memref<2x1x64xf32, #tpu.memory_space<vmem>>, vector<1x1x64xf32>
    %385 = vector.shape_cast %384 : vector<1x1x64xf32> to vector<1x64xf32>
    %386 = vector.broadcast %385 : vector<1x64xf32> to vector<16x64xf32>
    %387 = arith.addf %383, %386 : vector<16x64xf32>
    %cst_176 = arith.constant 5.000000e-01 : f32
    %388 = vector.broadcast %cst_176 : f32 to vector<16x64xf32>
    %389 = arith.mulf %388, %387 : vector<16x64xf32>
    %cst_177 = arith.constant 4.471500e-02 : f32
    %390 = vector.broadcast %cst_177 : f32 to vector<16x64xf32>
    %391 = arith.mulf %390, %387 : vector<16x64xf32>
    %392 = arith.mulf %391, %387 : vector<16x64xf32>
    %393 = arith.mulf %392, %387 : vector<16x64xf32>
    %394 = arith.addf %387, %393 : vector<16x64xf32>
    %cst_178 = arith.constant 0.797884583 : f32
    %395 = vector.broadcast %cst_178 : f32 to vector<16x64xf32>
    %396 = arith.mulf %395, %394 : vector<16x64xf32>
    %397 = math.tanh %396 : vector<16x64xf32>
    %cst_179 = arith.constant 1.000000e+00 : f32
    %398 = vector.broadcast %cst_179 : f32 to vector<16x64xf32>
    %399 = arith.addf %398, %397 : vector<16x64xf32>
    %400 = arith.mulf %389, %399 : vector<16x64xf32>
    %401 = arith.truncf %400 : vector<16x64xf32> to vector<16x64xbf16>
    %c1_180 = arith.constant 1 : index
    %c0_181 = arith.constant 0 : index
    %c0_182 = arith.constant 0 : index
    %402 = vector.load %arg20[%c1_180, %c0_181, %c0_182] : memref<2x64x32xbf16, #tpu.memory_space<vmem>>, vector<1x64x32xbf16>
    %403 = vector.shape_cast %402 : vector<1x64x32xbf16> to vector<64x32xbf16>
    %cst_183 = arith.constant dense<0.000000e+00> : vector<16x32xf32>
    %404 = tpu.matmul %401, %403, %cst_183 {dimension_numbers = #tpu.dot_dimension_numbers<[1], [0], [0], [1], [0, 0, 1, 1], [], []>} : vector<16x64xbf16>, vector<64x32xbf16>, vector<16x32xf32> -> vector<16x32xf32>
    %c1_184 = arith.constant 1 : index
    %c0_185 = arith.constant 0 : index
    %c0_186 = arith.constant 0 : index
    %405 = vector.load %arg21[%c1_184, %c0_185, %c0_186] : memref<2x1x32xf32, #tpu.memory_space<vmem>>, vector<1x1x32xf32>
    %406 = vector.shape_cast %405 : vector<1x1x32xf32> to vector<1x32xf32>
    %407 = vector.broadcast %406 : vector<1x32xf32> to vector<16x32xf32>
    %408 = arith.addf %404, %407 : vector<16x32xf32>
    %409 = arith.addf %408, %379 : vector<16x32xf32>
    %c1_187 = arith.constant 1 : index
    %c0_188 = arith.constant 0 : index
    %c0_189 = arith.constant 0 : index
    %410 = vector.load %arg22[%c1_187, %c0_188, %c0_189] : memref<2x1x32xf32, #tpu.memory_space<vmem>>, vector<1x1x32xf32>
    %411 = vector.shape_cast %410 : vector<1x1x32xf32> to vector<1x32xf32>
    %c1_190 = arith.constant 1 : index
    %c0_191 = arith.constant 0 : index
    %c0_192 = arith.constant 0 : index
    %412 = vector.load %arg23[%c1_190, %c0_191, %c0_192] : memref<2x1x32xf32, #tpu.memory_space<vmem>>, vector<1x1x32xf32>
    %413 = vector.shape_cast %412 : vector<1x1x32xf32> to vector<1x32xf32>
    %cst_193 = arith.constant dense<0.000000e+00> : vector<16xf32>
    %414 = vector.multi_reduction <add>, %409, %cst_193 [1] : vector<16x32xf32> to vector<16xf32>
    %415 = vector.shape_cast %414 : vector<16xf32> to vector<16x1xf32>
    %cst_194 = arith.constant 3.200000e+01 : f32
    %416 = vector.broadcast %cst_194 : f32 to vector<16x1xf32>
    %417 = arith.divf %415, %416 : vector<16x1xf32>
    %418 = vector.broadcast %417 : vector<16x1xf32> to vector<16x32xf32>
    %419 = arith.subf %409, %418 : vector<16x32xf32>
    %420 = arith.mulf %419, %419 : vector<16x32xf32>
    %cst_195 = arith.constant dense<0.000000e+00> : vector<16xf32>
    %421 = vector.multi_reduction <add>, %420, %cst_195 [1] : vector<16x32xf32> to vector<16xf32>
    %422 = vector.shape_cast %421 : vector<16xf32> to vector<16x1xf32>
    %cst_196 = arith.constant 3.200000e+01 : f32
    %423 = vector.broadcast %cst_196 : f32 to vector<16x1xf32>
    %424 = arith.divf %422, %423 : vector<16x1xf32>
    %425 = vector.broadcast %417 : vector<16x1xf32> to vector<16x32xf32>
    %426 = arith.subf %409, %425 : vector<16x32xf32>
    %cst_197 = arith.constant 9.99999996E-13 : f32
    %427 = vector.broadcast %cst_197 : f32 to vector<16x1xf32>
    %428 = arith.addf %424, %427 : vector<16x1xf32>
    %429 = math.rsqrt %428 : vector<16x1xf32>
    %430 = vector.broadcast %429 : vector<16x1xf32> to vector<16x32xf32>
    %431 = arith.mulf %426, %430 : vector<16x32xf32>
    %432 = vector.broadcast %411 : vector<1x32xf32> to vector<16x32xf32>
    %433 = arith.mulf %431, %432 : vector<16x32xf32>
    %434 = vector.broadcast %413 : vector<1x32xf32> to vector<16x32xf32>
    %435 = arith.addf %433, %434 : vector<16x32xf32>
    %c0_198 = arith.constant 0 : index
    %c0_199 = arith.constant 0 : index
    %436 = vector.load %arg24[%c0_198, %c0_199] : memref<16x32xf32, #tpu.memory_space<vmem>>, vector<16x32xf32>
    tpu.vector_store %arg24[%c0_198, %c0_199], %435 {strides = array<i32>} : memref<16x32xf32, #tpu.memory_space<vmem>>, vector<16x32xf32>,
    return
  }
}

</mosaic_0001>

<llo_original>
// kernel: tpu_custom_call.1
$region0: #{tpu_custom_call.1}
  #allocation0 [shape = 'u32[]', space=smem, size = 0x4, offset = 0x4, fixed_abs, tag = 'smem constant byte address 0x4 - core index']
  #allocation1 [shape = 'u32[72,128]{1,0:T(1,128)}', space=vmem, size = 0x9000, scoped, tag = 'internal scratch']
  %s0 = inlined_call_operand.vmem [shape: s32[16,1], index: 0, kind: input, shape index: {}]
  %s1 = inlined_call_operand.vmem [shape: s32[16,1], index: 1, kind: input, shape index: {}]
  %s2 = inlined_call_operand.vmem [shape: f32[2,8], index: 2, kind: input, shape index: {}]
  %s3 = inlined_call_operand.vmem [shape: f32[100,32], index: 3, kind: input, shape index: {}]
  %s4 = inlined_call_operand.vmem [shape: f32[2,32], index: 4, kind: input, shape index: {}]
  %s5 = inlined_call_operand.vmem [shape: f32[16,32], index: 5, kind: input, shape index: {}]
  %s6 = inlined_call_operand.vmem [shape: f32[1,32], index: 6, kind: input, shape index: {}]
  %s7 = inlined_call_operand.vmem [shape: f32[1,32], index: 7, kind: input, shape index: {}]
  %s8 = inlined_call_operand.vmem [shape: bf16[2,32,32], index: 8, kind: input, shape index: {}]
  %s9 = inlined_call_operand.vmem [shape: f32[2,1,32], index: 9, kind: input, shape index: {}]
  %s10 = inlined_call_operand.vmem [shape: bf16[2,32,32], index: 10, kind: input, shape index: {}]
  %s11 = inlined_call_operand.vmem [shape: f32[2,1,32], index: 11, kind: input, shape index: {}]
  %s12 = inlined_call_operand.vmem [shape: bf16[2,32,32], index: 12, kind: input, shape index: {}]
  %s13 = inlined_call_operand.vmem [shape: f32[2,1,32], index: 13, kind: input, shape index: {}]
  %s14 = inlined_call_operand.vmem [shape: bf16[2,32,32], index: 14, kind: input, shape index: {}]
  %s15 = inlined_call_operand.vmem [shape: f32[2,1,32], index: 15, kind: input, shape index: {}]
  %s16 = inlined_call_operand.vmem [shape: f32[2,1,32], index: 16, kind: input, shape index: {}]
  %s17 = inlined_call_operand.vmem [shape: f32[2,1,32], index: 17, kind: input, shape index: {}]
  %s18 = inlined_call_operand.vmem [shape: bf16[2,32,64], index: 18, kind: input, shape index: {}]
  %s19 = inlined_call_operand.vmem [shape: f32[2,1,64], index: 19, kind: input, shape index: {}]
  %s20 = inlined_call_operand.vmem [shape: bf16[2,64,32], index: 20, kind: input, shape index: {}]
  %s21 = inlined_call_operand.vmem [shape: f32[2,1,32], index: 21, kind: input, shape index: {}]
  %s22 = inlined_call_operand.vmem [shape: f32[2,1,32], index: 22, kind: input, shape index: {}]
  %s23 = inlined_call_operand.vmem [shape: f32[2,1,32], index: 23, kind: input, shape index: {}]
  %s24 = inlined_call_operand.hbm [shape: f32[16,32], index: 24, kind: output, shape index: {}]
  %s25 = sld [smem:[#allocation0]]
  $region106: #{tpu_custom_call.1} parent=0
    _
  %s27 = ssub.s32 1, %s25
  %s28 = scalar_select 0, %s27, %s25
  $region1: #{tpu_custom_call.1} parent=0
    #allocation2 [shape = 'u8[8192]{0}', space=vmem, size = 0x2000, scoped, tag = 'output window, operand 0, single buffered']
    #allocation3 [shape = 's32[1]{0}', space=sflag, size = 0x4, scoped, tag = 'scoped memory for tpu_custom_call.1']
    %29 = vsyncpa [#allocation3], 0
    // Predicated region
    $region2: #{tpu_custom_call.1} parent=1 // pred_check
      _
    $region3: #{tpu_custom_call.1} parent=1 // pred_check_branch
      %31 = sbr.rel (0) target = $region5
    $region4: #{tpu_custom_call.1} parent=1 // pred_region
      _
    $region5: #{tpu_custom_call.1} parent=1 // pred_fallthru
      _
    // Predicated region
    $region6: #{tpu_custom_call.1} parent=1 // pred_check
      _
    $region7: #{tpu_custom_call.1} parent=1 // pred_check_branch
      %33 = sbr.rel (0) target = $region9
    $region8: #{tpu_custom_call.1} parent=1 // pred_region
      _
    $region9: #{tpu_custom_call.1} parent=1 // pred_fallthru
      _
    // Predicated region
    $region10: #{tpu_custom_call.1} parent=1 // pred_check
      _
    $region11: #{tpu_custom_call.1} parent=1 // pred_check_branch
      %35 = sbr.rel (0) target = $region13
    $region12: #{tpu_custom_call.1} parent=1 // pred_region
      _
    $region13: #{tpu_custom_call.1} parent=1 // pred_fallthru
      _
    // Predicated region
    $region14: #{tpu_custom_call.1} parent=1 // pred_check
      _
    $region15: #{tpu_custom_call.1} parent=1 // pred_check_branch
      %37 = sbr.rel (0) target = $region17
    $region16: #{tpu_custom_call.1} parent=1 // pred_region
      _
    $region17: #{tpu_custom_call.1} parent=1 // pred_fallthru
      _
    // Predicated region
    $region18: #{tpu_custom_call.1} parent=1 // pred_check
      _
    $region19: #{tpu_custom_call.1} parent=1 // pred_check_branch
      %39 = sbr.rel (0) target = $region21
    $region20: #{tpu_custom_call.1} parent=1 // pred_region
      _
    $region21: #{tpu_custom_call.1} parent=1 // pred_fallthru
      _
    // Predicated region
    $region22: #{tpu_custom_call.1} parent=1 // pred_check
      _
    $region23: #{tpu_custom_call.1} parent=1 // pred_check_branch
      %41 = sbr.rel (0) target = $region25
    $region24: #{tpu_custom_call.1} parent=1 // pred_region
      _
    $region25: #{tpu_custom_call.1} parent=1 // pred_fallthru
      _
    // Predicated region
    $region26: #{tpu_custom_call.1} parent=1 // pred_check
      _
    $region27: #{tpu_custom_call.1} parent=1 // pred_check_branch
      %43 = sbr.rel (0) target = $region29
    $region28: #{tpu_custom_call.1} parent=1 // pred_region
      _
    $region29: #{tpu_custom_call.1} parent=1 // pred_fallthru
      _
    // Predicated region
    $region30: #{tpu_custom_call.1} parent=1 // pred_check
      _
    $region31: #{tpu_custom_call.1} parent=1 // pred_check_branch
      %45 = sbr.rel (0) target = $region33
    $region32: #{tpu_custom_call.1} parent=1 // pred_region
      _
    $region33: #{tpu_custom_call.1} parent=1 // pred_fallthru
      _
    // Predicated region
    $region34: #{tpu_custom_call.1} parent=1 // pred_check
      _
    $region35: #{tpu_custom_call.1} parent=1 // pred_check_branch
      %47 = sbr.rel (0) target = $region37
    $region36: #{tpu_custom_call.1} parent=1 // pred_region
      _
    $region37: #{tpu_custom_call.1} parent=1 // pred_fallthru
      _
    // Predicated region
    $region38: #{tpu_custom_call.1} parent=1 // pred_check
      _
    $region39: #{tpu_custom_call.1} parent=1 // pred_check_branch
      %49 = sbr.rel (0) target = $region41
    $region40: #{tpu_custom_call.1} parent=1 // pred_region
      _
    $region41: #{tpu_custom_call.1} parent=1 // pred_fallthru
      _
    // Predicated region
    $region42: #{tpu_custom_call.1} parent=1 // pred_check
      _
    $region43: #{tpu_custom_call.1} parent=1 // pred_check_branch
      %51 = sbr.rel (0) target = $region45
    $region44: #{tpu_custom_call.1} parent=1 // pred_region
      _
    $region45: #{tpu_custom_call.1} parent=1 // pred_fallthru
      _
    // Predicated region
    $region46: #{tpu_custom_call.1} parent=1 // pred_check
      _
    $region47: #{tpu_custom_call.1} parent=1 // pred_check_branch
      %53 = sbr.rel (0) target = $region49
    $region48: #{tpu_custom_call.1} parent=1 // pred_region
      _
    $region49: #{tpu_custom_call.1} parent=1 // pred_fallthru
      _
    // Predicated region
    $region50: #{tpu_custom_call.1} parent=1 // pred_check
      _
    $region51: #{tpu_custom_call.1} parent=1 // pred_check_branch
      %55 = sbr.rel (0) target = $region53
    $region52: #{tpu_custom_call.1} parent=1 // pred_region
      _
    $region53: #{tpu_custom_call.1} parent=1 // pred_fallthru
      _
    // Predicated region
    $region54: #{tpu_custom_call.1} parent=1 // pred_check
      _
    $region55: #{tpu_custom_call.1} parent=1 // pred_check_branch
      %57 = sbr.rel (0) target = $region57
    $region56: #{tpu_custom_call.1} parent=1 // pred_region
      _
    $region57: #{tpu_custom_call.1} parent=1 // pred_fallthru
      _
    // Predicated region
    $region58: #{tpu_custom_call.1} parent=1 // pred_check
      _
    $region59: #{tpu_custom_call.1} parent=1 // pred_check_branch
      %59 = sbr.rel (0) target = $region61
    $region60: #{tpu_custom_call.1} parent=1 // pred_region
      _
    $region61: #{tpu_custom_call.1} parent=1 // pred_fallthru
      _
    // Predicated region
    $region62: #{tpu_custom_call.1} parent=1 // pred_check
      _
    $region63: #{tpu_custom_call.1} parent=1 // pred_check_branch
      %61 = sbr.rel (0) target = $region65
    $region64: #{tpu_custom_call.1} parent=1 // pred_region
      _
    $region65: #{tpu_custom_call.1} parent=1 // pred_fallthru
      _
    // Predicated region
    $region66: #{tpu_custom_call.1} parent=1 // pred_check
      _
    $region67: #{tpu_custom_call.1} parent=1 // pred_check_branch
      %63 = sbr.rel (0) target = $region69
    $region68: #{tpu_custom_call.1} parent=1 // pred_region
      _
    $region69: #{tpu_custom_call.1} parent=1 // pred_fallthru
      _
    // Predicated region
    $region70: #{tpu_custom_call.1} parent=1 // pred_check
      _
    $region71: #{tpu_custom_call.1} parent=1 // pred_check_branch
      %65 = sbr.rel (0) target = $region73
    $region72: #{tpu_custom_call.1} parent=1 // pred_region
      _
    $region73: #{tpu_custom_call.1} parent=1 // pred_fallthru
      _
    // Predicated region
    $region74: #{tpu_custom_call.1} parent=1 // pred_check
      _
    $region75: #{tpu_custom_call.1} parent=1 // pred_check_branch
      %67 = sbr.rel (0) target = $region77
    $region76: #{tpu_custom_call.1} parent=1 // pred_region
      _
    $region77: #{tpu_custom_call.1} parent=1 // pred_fallthru
      _
    // Predicated region
    $region78: #{tpu_custom_call.1} parent=1 // pred_check
      _
    $region79: #{tpu_custom_call.1} parent=1 // pred_check_branch
      %69 = sbr.rel (0) target = $region81
    $region80: #{tpu_custom_call.1} parent=1 // pred_region
      _
    $region81: #{tpu_custom_call.1} parent=1 // pred_fallthru
      _
    // Predicated region
    $region82: #{tpu_custom_call.1} parent=1 // pred_check
      _
    $region83: #{tpu_custom_call.1} parent=1 // pred_check_branch
      %71 = sbr.rel (0) target = $region85
    $region84: #{tpu_custom_call.1} parent=1 // pred_region
      _
    $region85: #{tpu_custom_call.1} parent=1 // pred_fallthru
      _
    // Predicated region
    $region86: #{tpu_custom_call.1} parent=1 // pred_check
      _
    $region87: #{tpu_custom_call.1} parent=1 // pred_check_branch
      %73 = sbr.rel (0) target = $region89
    $region88: #{tpu_custom_call.1} parent=1 // pred_region
      _
    $region89: #{tpu_custom_call.1} parent=1 // pred_fallthru
      _
    // Predicated region
    $region90: #{tpu_custom_call.1} parent=1 // pred_check
      _
    $region91: #{tpu_custom_call.1} parent=1 // pred_check_branch
      %75 = sbr.rel (0) target = $region93
    $region92: #{tpu_custom_call.1} parent=1 // pred_region
      _
    $region93: #{tpu_custom_call.1} parent=1 // pred_fallthru
      _
    // Predicated region
    $region94: #{tpu_custom_call.1} parent=1 // pred_check
      _
    $region95: #{tpu_custom_call.1} parent=1 // pred_check_branch
      %77 = sbr.rel (0) target = $region97
    $region96: #{tpu_custom_call.1} parent=1 // pred_region
      _
    $region97: #{tpu_custom_call.1} parent=1 // pred_fallthru
      _
    %v79 = vld [vmem:[%s0] sm:$0xff]
    %v80 = vld [vmem:[%s0 + $0x8] sm:$0xff]
    %v81 = vld [vmem:[%s1] sm:$0xff]
    %v82 = vld [vmem:[%s1 + $0x8] sm:$0xff]
    %v83 = vlaneseq
    %v84 = vand.u32 %v83, 127
    %85 = vset.pattern.permute.xlu0 0
    %86 = vperm.xlu0 %85, %v79
    %v87 = vpop.permute.xlu0 %86
    %88 = vset.pattern.permute.xlu0 0
    %89 = vperm.xlu0 %88, %v80
    %v90 = vpop.permute.xlu0 %89
    %vm91 = vcmp.eq.s32.totalorder %v87, %v84
    %vm92 = vcmp.eq.s32.totalorder %v90, %v84
    %v93 = vsel %vm91, 1, 0
    %v94 = vsel %vm92, 1, 0
    %v95 = vcvt.s32.f32 %v93
    %v96 = vcvt.s32.f32 %v94
    %97 = vset.pattern.permute.xlu0 0
    %98 = vperm.xlu0 %97, %v81
    %v99 = vpop.permute.xlu0 %98
    %100 = vset.pattern.permute.xlu0 0
    %101 = vperm.xlu0 %100, %v82
    %v102 = vpop.permute.xlu0 %101
    %vm103 = vcmp.eq.s32.totalorder %v99, %v84
    %vm104 = vcmp.eq.s32.totalorder %v102, %v84
    %v105 = vsel %vm103, 1, 0
    %v106 = vsel %vm104, 1, 0
    %v107 = vcvt.s32.f32 %v105
    %v108 = vcvt.s32.f32 %v106
    %v109 = vld [vmem:[%s3] sm:$0xff]
    %v110 = vld [vmem:[%s3 + $0x8] sm:$0xff]
    %v111 = vld [vmem:[%s3 + $0x10] sm:$0xff]
    %v112 = vld [vmem:[%s3 + $0x18] sm:$0xff]
    %v113 = vld [vmem:[%s3 + $0x20] sm:$0xff]
    %v114 = vld [vmem:[%s3 + $0x28] sm:$0xff]
    %v115 = vld [vmem:[%s3 + $0x30] sm:$0xff]
    %v116 = vld [vmem:[%s3 + $0x38] sm:$0xff]
    %v117 = vld [vmem:[%s3 + $0x40] sm:$0xff]
    %v118 = vld [vmem:[%s3 + $0x48] sm:$0xff]
    %v119 = vld [vmem:[%s3 + $0x50] sm:$0xff]
    %v120 = vld [vmem:[%s3 + $0x58] sm:$0xff]
    %v121 = vld [vmem:[%s3 + $0x60] sm:$0xf]
    %v122 = vld [vmem:[%s4] sm:$0x3]
    %vm123 = vcmask 15360
    %v125 = vsel %vm123, %v107, 0
    %v128 = vsel %vm123, %v108, 0
    %vm130 = vcmask 1041408
    %v132 = vsel %vm130, %v122, 0
    %134 = vmatpush.msra.mxu0 0.0
    %135 = vmatpush.msra.mxu0 0.0
    %136 = vmatpush.msra.mxu0 0.0
    %137 = vmatpush.msra.mxu0 0.0
    %138 = vmatpush.msra.mxu0 0.0
    %139 = vmatpush.msra.mxu0 0.0
    %140 = vmatpush.msra.mxu0 0.0
    %141 = vmatpush.msra.mxu0 0.0
    %142 = vmatpush.msra.mxu0 0.0
    %143 = vmatpush.msra.mxu0 0.0
    %144 = vmatpush.msra.mxu0 0.0
    %145 = vmatpush.msra.mxu0 0.0
    %146 = vmatpush.msra.mxu0 0.0
    %147 = vmatpush.msra.mxu0 0.0
    %148 = vmatpush.msra.mxu0 0.0
    %149 = vmatpush.msra.mxu0 %v132
    %150 = vmatmul.f32.gmra.mxu0 %v125
    %v151 = vpop.f32.mrf.mxu0
    %v152 = vadd.f32 0.0, %v151
    %153 = vmatmul.f32.gmra.mxu0 %v128
    %v154 = vpop.f32.mrf.mxu0
    %v155 = vadd.f32 0.0, %v154
    %156 = vdwg.mxu0
    %v157 = vld [vmem:[%s5] sm:$0xff]
    %v158 = vld [vmem:[%s5 + $0x8] sm:$0xff]
    %vm159 = vcmask 818176
    %v161 = vsel %vm159, %v95, 0
    %v164 = vsel %vm159, %v96, 0
    %vm166 = vcmask 1043456
    %v168 = vsel %vm166, %v121, 0
    %170 = vmatpush.msra.mxu0 0.0
    %171 = vmatpush.msra.mxu0 0.0
    %172 = vmatpush.msra.mxu0 0.0
    %173 = vmatpush.msra.mxu0 %v168
    %174 = vmatpush.msra.mxu0 %v120
    %175 = vmatpush.msra.mxu0 %v119
    %176 = vmatpush.msra.mxu0 %v118
    %177 = vmatpush.msra.mxu0 %v117
    %178 = vmatpush.msra.mxu0 %v116
    %179 = vmatpush.msra.mxu0 %v115
    %180 = vmatpush.msra.mxu0 %v114
    %181 = vmatpush.msra.mxu0 %v113
    %182 = vmatpush.msra.mxu0 %v112
    %183 = vmatpush.msra.mxu0 %v111
    %184 = vmatpush.msra.mxu0 %v110
    %185 = vmatpush.msra.mxu0 %v109
    %186 = vmatmul.f32.gmra.mxu0 %v161
    %v187 = vpop.f32.mrf.mxu0
    %v188 = vadd.f32 %v157, %v187
    %189 = vmatmul.f32.gmra.mxu0 %v164
    %v190 = vpop.f32.mrf.mxu0
    %v191 = vadd.f32 %v158, %v190
    %192 = vdwg.mxu0
    %v193 = vadd.f32 %v188, %v152
    %v194 = vadd.f32 %v191, %v155
    %v195 = vld [vmem:[%s6] sm:$0x1]
    %v196 = vld [vmem:[%s7] sm:$0x1]
    %vm197 = vcmask 261120
    %v198 = vsel %vm197, %v193, 0.0
    %199 = vadd.xlane.f32.xlu0 %v198
    %v200 = vpop.xlane.xlu0 %199
    %v201 = vsel %vm197, %v194, 0.0
    %202 = vadd.xlane.f32.xlu0 %v201
    %v203 = vpop.xlane.xlu0 %202
    %v204 = vrcp.pop 32.0
    %v205 = vmul.f32 32.0, %v204
    %v206 = vsub.f32 1.0, %v205
    %v207 = vmul.f32 %v204, %v206
    %v208 = vadd.f32 %v204, %v207
    %vm209 = vweird.f32 %v204
    %v210 = vsel %vm209, %v204, %v208
    %v211 = vmul.f32 %v200, %v210
    %v212 = vmul.f32 %v203, %v210
    %v213 = vsub.f32 %v193, %v211
    %v214 = vsub.f32 %v194, %v212
    %v215 = vmul.f32 %v213, %v213
    %v216 = vmul.f32 %v214, %v214
    %v217 = vsel %vm197, %v215, 0.0
    %218 = vadd.xlane.f32.xlu0 %v217
    %v219 = vpop.xlane.xlu0 %218
    %v220 = vsel %vm197, %v216, 0.0
    %221 = vadd.xlane.f32.xlu0 %v220
    %v222 = vpop.xlane.xlu0 %221
    %v223 = vmul.f32 %v219, %v210
    %v224 = vmul.f32 %v222, %v210
    %v225 = vadd.f32 %v223, 1e-12
    %v226 = vadd.f32 %v224, 1e-12
    %v227 = vrsqrt.pop %v225
    %v228 = vmul.f32 %v227, %v225
    %v229 = vmul.f32 %v228, %v227
    %v230 = vmul.f32 0.5, %v229
    %v231 = vsub.f32 1.5, %v230
    %v232 = vmul.f32 %v227, %v231
    %vm233 = vweird.f32 %v225
    %vm234 = vweird.f32 %v227
    %vm235 = vmor %vm233, %vm234
    %v236 = vsel %vm235, %v227, %v232
    %v237 = vrsqrt.pop %v226
    %v238 = vmul.f32 %v237, %v226
    %v239 = vmul.f32 %v238, %v237
    %v240 = vmul.f32 0.5, %v239
    %v241 = vsub.f32 1.5, %v240
    %v242 = vmul.f32 %v237, %v241
    %vm243 = vweird.f32 %v226
    %vm244 = vweird.f32 %v237
    %vm245 = vmor %vm243, %vm244
    %v246 = vsel %vm245, %v237, %v242
    %v247 = vmul.f32 %v213, %v236
    %v248 = vmul.f32 %v214, %v246
    %v250 = vperm.slane %v195, 0
    %v252 = vmul.f32 %v247, %v250
    %v253 = vmul.f32 %v248, %v250
    %v255 = vperm.slane %v196, 0
    %v257 = vadd.f32 %v252, %v255
    %v258 = vadd.f32 %v253, %v255
    %v259 = vld [vmem:[%s2] sm:$0x3]
    %v260 = vsub.f32 1.0, %v259
    %v261 = vmul.f32 %v260, -10000.0
    %v262 = vpack.c.bf16 %v258, %v257
    %v263 = vld [vmem:[%s8] sm:$0xf]
    %v264 = vld [vmem:[%s8 + $0x4] sm:$0xf]
    %v265 = vld [vmem:[%s8 + $0x8] sm:$0xf]
    %v266 = vld [vmem:[%s8 + $0xc] sm:$0xf]
    %v267 = vld [vmem:[%s9] sm:$0x1]
    %v269 = vperm.slane %v267, 0
    %v275 = vunpack.c.l.b16 %v263
    %v276 = vunpack.c.l.b16 %v264
    %v277 = vunpack.c.l.b16 %v265
    %v278 = vunpack.c.l.b16 %v266
    %v279 = vpack.c.b16 %v276, %v275
    %v280 = vpack.c.b16 %v278, %v277
    %v284 = vsel %vm197, %v262, 0
    %286 = vmatpush.bf16.msra.mxu0 0
    %287 = vmatpush.bf16.msra.mxu0 0
    %288 = vmatpush.bf16.msra.mxu0 0
    %289 = vmatpush.bf16.msra.mxu0 0
    %290 = vmatpush.bf16.msra.mxu0 0
    %291 = vmatpush.bf16.msra.mxu0 0
    %292 = vmatpush.bf16.msra.mxu0 %v280
    %293 = vmatpush.bf16.msra.mxu0 %v279
    %294 = vmatmul.bf16.gmra.mxu0 %v284
    %v295 = vpop.f32.mrf.mxu0
    %v296 = vadd.f32 %v269, %v295
    %v297 = vpop.f32.mrf.mxu0
    %v298 = vadd.f32 %v269, %v297
    %299 = vdwg.mxu0
    %v300 = vld [vmem:[%s10] sm:$0xf]
    %v301 = vld [vmem:[%s10 + $0x4] sm:$0xf]
    %v302 = vld [vmem:[%s10 + $0x8] sm:$0xf]
    %v303 = vld [vmem:[%s10 + $0xc] sm:$0xf]
    %v304 = vld [vmem:[%s11] sm:$0x1]
    %v306 = vperm.slane %v304, 0
    %v312 = vunpack.c.l.b16 %v300
    %v313 = vunpack.c.l.b16 %v301
    %v314 = vunpack.c.l.b16 %v302
    %v315 = vunpack.c.l.b16 %v303
    %v316 = vpack.c.b16 %v313, %v312
    %v317 = vpack.c.b16 %v315, %v314
    %320 = vmatpush.bf16.msra.mxu0 0
    %321 = vmatpush.bf16.msra.mxu0 0
    %322 = vmatpush.bf16.msra.mxu0 0
    %323 = vmatpush.bf16.msra.mxu0 0
    %324 = vmatpush.bf16.msra.mxu0 0
    %325 = vmatpush.bf16.msra.mxu0 0
    %326 = vmatpush.bf16.msra.mxu0 %v317
    %327 = vmatpush.bf16.msra.mxu0 %v316
    %328 = vmatmul.bf16.gmra.mxu0 %v284
    %v329 = vpop.f32.mrf.mxu0
    %v330 = vadd.f32 %v306, %v329
    %v331 = vpop.f32.mrf.mxu0
    %v332 = vadd.f32 %v306, %v331
    %333 = vdwg.mxu0
    %v334 = vld [vmem:[%s12] sm:$0xf]
    %v335 = vld [vmem:[%s12 + $0x4] sm:$0xf]
    %v336 = vld [vmem:[%s12 + $0x8] sm:$0xf]
    %v337 = vld [vmem:[%s12 + $0xc] sm:$0xf]
    %v338 = vld [vmem:[%s13] sm:$0x1]
    %v340 = vperm.slane %v338, 0
    %v346 = vunpack.c.l.b16 %v334
    %v347 = vunpack.c.l.b16 %v335
    %v348 = vunpack.c.l.b16 %v336
    %v349 = vunpack.c.l.b16 %v337
    %v350 = vpack.c.b16 %v347, %v346
    %v351 = vpack.c.b16 %v349, %v348
    %354 = vmatpush.bf16.msra.mxu0 0
    %355 = vmatpush.bf16.msra.mxu0 0
    %356 = vmatpush.bf16.msra.mxu0 0
    %357 = vmatpush.bf16.msra.mxu0 0
    %358 = vmatpush.bf16.msra.mxu0 0
    %359 = vmatpush.bf16.msra.mxu0 0
    %360 = vmatpush.bf16.msra.mxu0 %v351
    %361 = vmatpush.bf16.msra.mxu0 %v350
    %362 = vmatmul.bf16.gmra.mxu0 %v284
    %v363 = vpop.f32.mrf.mxu0
    %v364 = vadd.f32 %v340, %v363
    %v365 = vpop.f32.mrf.mxu0
    %v366 = vadd.f32 %v340, %v365
    %367 = vdwg.mxu0
    %vm368 = vcmask 130048
    %v370 = vsel %vm368, %v296, 0
    %v373 = vsel %vm368, %v330, 0
    %375 = vmatpush.xpose.msra.mxu0 0.0
    %376 = vmatpush.xpose.msra.mxu0 0.0
    %377 = vmatpush.xpose.msra.mxu0 0.0
    %378 = vmatpush.xpose.msra.mxu0 0.0
    %379 = vmatpush.xpose.msra.mxu0 0.0
    %380 = vmatpush.xpose.msra.mxu0 0.0
    %381 = vmatpush.xpose.msra.mxu0 0.0
    %382 = vmatpush.xpose.msra.mxu0 0.0
    %383 = vmatpush.xpose.msra.mxu0 0.0
    %384 = vmatpush.xpose.msra.mxu0 0.0
    %385 = vmatpush.xpose.msra.mxu0 0.0
    %386 = vmatpush.xpose.msra.mxu0 0.0
    %387 = vmatpush.xpose.msra.mxu0 0.0
    %388 = vmatpush.xpose.msra.mxu0 0.0
    %389 = vmatpush.xpose.msra.mxu0 0.0
    %390 = vmatpush.xpose.msra.mxu0 %v373
    %391 = vmatmul.f32.gmra.mxu0 %v370
    %v392 = vpop.f32.mrf.mxu0
    %v393 = vadd.f32 0.0, %v392
    %394 = vdwg.mxu0
    %v395 = vmul.f32 %v393, 0.25
    %v396 = vperm.slane %v261, 0
    %v397 = vadd.f32 %v395, %v396
    %vm398 = vcmask 64512
    %v399 = vsel %vm398, %v397, -inf
    %400 = vmax.xlane.f32.xlu0 %v399
    %v401 = vpop.xlane.xlu0 %400
    %v402 = vsub.f32 %v397, %v401
    %v403 = vmul.f32 %v402, 1.442695
    %v404 = vpow.pop %v403
    %v405 = vsel %vm398, %v404, 0.0
    %406 = vadd.xlane.f32.xlu0 %v405
    %v407 = vpop.xlane.xlu0 %406
    %v408 = vrcp.pop %v407
    %v409 = vmul.f32 %v404, %v408
    %v411 = vsel %vm398, %v409, 0
    %413 = vmatpush.msra.mxu0 0.0
    %414 = vmatpush.msra.mxu0 0.0
    %415 = vmatpush.msra.mxu0 0.0
    %416 = vmatpush.msra.mxu0 0.0
    %417 = vmatpush.msra.mxu0 0.0
    %418 = vmatpush.msra.mxu0 0.0
    %419 = vmatpush.msra.mxu0 0.0
    %420 = vmatpush.msra.mxu0 0.0
    %421 = vmatpush.msra.mxu0 0.0
    %422 = vmatpush.msra.mxu0 0.0
    %423 = vmatpush.msra.mxu0 0.0
    %424 = vmatpush.msra.mxu0 0.0
    %425 = vmatpush.msra.mxu0 0.0
    %426 = vmatpush.msra.mxu0 0.0
    %427 = vmatpush.msra.mxu0 0.0
    %428 = vmatpush.msra.mxu0 %v364
    %429 = vmatmul.f32.gmra.mxu0 %v411
    %v430 = vpop.f32.mrf.mxu0
    %v431 = vadd.f32 0.0, %v430
    %432 = vdwg.mxu0
    %433 = vrot.lane.b32.xlu0 %v296, 112
    %v434 = vpop.permute.xlu0 %433
    %435 = vrot.lane.b32.xlu0 %v330, 112
    %v436 = vpop.permute.xlu0 %435
    %v437 = vsel %vm368, %v434, 0
    %v439 = vsel %vm368, %v436, 0
    %441 = vmatpush.xpose.msra.mxu0 0.0
    %442 = vmatpush.xpose.msra.mxu0 0.0
    %443 = vmatpush.xpose.msra.mxu0 0.0
    %444 = vmatpush.xpose.msra.mxu0 0.0
    %445 = vmatpush.xpose.msra.mxu0 0.0
    %446 = vmatpush.xpose.msra.mxu0 0.0
    %447 = vmatpush.xpose.msra.mxu0 0.0
    %448 = vmatpush.xpose.msra.mxu0 0.0
    %449 = vmatpush.xpose.msra.mxu0 0.0
    %450 = vmatpush.xpose.msra.mxu0 0.0
    %451 = vmatpush.xpose.msra.mxu0 0.0
    %452 = vmatpush.xpose.msra.mxu0 0.0
    %453 = vmatpush.xpose.msra.mxu0 0.0
    %454 = vmatpush.xpose.msra.mxu0 0.0
    %455 = vmatpush.xpose.msra.mxu0 0.0
    %456 = vmatpush.xpose.msra.mxu0 %v439
    %457 = vmatmul.f32.gmra.mxu0 %v437
    %v458 = vpop.f32.mrf.mxu0
    %v459 = vadd.f32 0.0, %v458
    %460 = vdwg.mxu0
    %v461 = vmul.f32 %v459, 0.25
    %v462 = vadd.f32 %v461, %v396
    %v463 = vsel %vm398, %v462, -inf
    %464 = vmax.xlane.f32.xlu0 %v463
    %v465 = vpop.xlane.xlu0 %464
    %v466 = vsub.f32 %v462, %v465
    %v467 = vmul.f32 %v466, 1.442695
    %v468 = vpow.pop %v467
    %v469 = vsel %vm398, %v468, 0.0
    %470 = vadd.xlane.f32.xlu0 %v469
    %v471 = vpop.xlane.xlu0 %470
    %v472 = vrcp.pop %v471
    %v473 = vmul.f32 %v468, %v472
    %475 = vrot.lane.b32.xlu0 %v364, 112
    %v476 = vpop.permute.xlu0 %475
    %v479 = vsel %vm398, %v473, 0
    %481 = vmatpush.msra.mxu0 0.0
    %482 = vmatpush.msra.mxu0 0.0
    %483 = vmatpush.msra.mxu0 0.0
    %484 = vmatpush.msra.mxu0 0.0
    %485 = vmatpush.msra.mxu0 0.0
    %486 = vmatpush.msra.mxu0 0.0
    %487 = vmatpush.msra.mxu0 0.0
    %488 = vmatpush.msra.mxu0 0.0
    %489 = vmatpush.msra.mxu0 0.0
    %490 = vmatpush.msra.mxu0 0.0
    %491 = vmatpush.msra.mxu0 0.0
    %492 = vmatpush.msra.mxu0 0.0
    %493 = vmatpush.msra.mxu0 0.0
    %494 = vmatpush.msra.mxu0 0.0
    %495 = vmatpush.msra.mxu0 0.0
    %496 = vmatpush.msra.mxu0 %v476
    %497 = vmatmul.f32.gmra.mxu0 %v479
    %v498 = vpop.f32.mrf.mxu0
    %v499 = vadd.f32 0.0, %v498
    %500 = vdwg.mxu0
    %502 = vrot.lane.b32.xlu0 %v499, 16
    %v503 = vpop.permute.xlu0 %502
    %v505 = vsel %vm368, %v431, %v503
    %v507 = vsel %vm368, %v298, 0
    %v510 = vsel %vm368, %v332, 0
    %512 = vmatpush.xpose.msra.mxu0 0.0
    %513 = vmatpush.xpose.msra.mxu0 0.0
    %514 = vmatpush.xpose.msra.mxu0 0.0
    %515 = vmatpush.xpose.msra.mxu0 0.0
    %516 = vmatpush.xpose.msra.mxu0 0.0
    %517 = vmatpush.xpose.msra.mxu0 0.0
    %518 = vmatpush.xpose.msra.mxu0 0.0
    %519 = vmatpush.xpose.msra.mxu0 0.0
    %520 = vmatpush.xpose.msra.mxu0 0.0
    %521 = vmatpush.xpose.msra.mxu0 0.0
    %522 = vmatpush.xpose.msra.mxu0 0.0
    %523 = vmatpush.xpose.msra.mxu0 0.0
    %524 = vmatpush.xpose.msra.mxu0 0.0
    %525 = vmatpush.xpose.msra.mxu0 0.0
    %526 = vmatpush.xpose.msra.mxu0 0.0
    %527 = vmatpush.xpose.msra.mxu0 %v510
    %528 = vmatmul.f32.gmra.mxu0 %v507
    %v529 = vpop.f32.mrf.mxu0
    %v530 = vadd.f32 0.0, %v529
    %531 = vdwg.mxu0
    %v532 = vmul.f32 %v530, 0.25
    %v533 = vperm.slane %v261, 1
    %v534 = vadd.f32 %v532, %v533
    %v535 = vsel %vm398, %v534, -inf
    %536 = vmax.xlane.f32.xlu0 %v535
    %v537 = vpop.xlane.xlu0 %536
    %v538 = vsub.f32 %v534, %v537
    %v539 = vmul.f32 %v538, 1.442695
    %v540 = vpow.pop %v539
    %v541 = vsel %vm398, %v540, 0.0
    %542 = vadd.xlane.f32.xlu0 %v541
    %v543 = vpop.xlane.xlu0 %542
    %v544 = vrcp.pop %v543
    %v545 = vmul.f32 %v540, %v544
    %v547 = vsel %vm398, %v545, 0
    %549 = vmatpush.msra.mxu0 0.0
    %550 = vmatpush.msra.mxu0 0.0
    %551 = vmatpush.msra.mxu0 0.0
    %552 = vmatpush.msra.mxu0 0.0
    %553 = vmatpush.msra.mxu0 0.0
    %554 = vmatpush.msra.mxu0 0.0
    %555 = vmatpush.msra.mxu0 0.0
    %556 = vmatpush.msra.mxu0 0.0
    %557 = vmatpush.msra.mxu0 0.0
    %558 = vmatpush.msra.mxu0 0.0
    %559 = vmatpush.msra.mxu0 0.0
    %560 = vmatpush.msra.mxu0 0.0
    %561 = vmatpush.msra.mxu0 0.0
    %562 = vmatpush.msra.mxu0 0.0
    %563 = vmatpush.msra.mxu0 0.0
    %564 = vmatpush.msra.mxu0 %v366
    %565 = vmatmul.f32.gmra.mxu0 %v547
    %v566 = vpop.f32.mrf.mxu0
    %v567 = vadd.f32 0.0, %v566
    %568 = vdwg.mxu0
    %569 = vrot.lane.b32.xlu0 %v298, 112
    %v570 = vpop.permute.xlu0 %569
    %571 = vrot.lane.b32.xlu0 %v332, 112
    %v572 = vpop.permute.xlu0 %571
    %v573 = vsel %vm368, %v570, 0
    %v575 = vsel %vm368, %v572, 0
    %577 = vmatpush.xpose.msra.mxu0 0.0
    %578 = vmatpush.xpose.msra.mxu0 0.0
    %579 = vmatpush.xpose.msra.mxu0 0.0
    %580 = vmatpush.xpose.msra.mxu0 0.0
    %581 = vmatpush.xpose.msra.mxu0 0.0
    %582 = vmatpush.xpose.msra.mxu0 0.0
    %583 = vmatpush.xpose.msra.mxu0 0.0
    %584 = vmatpush.xpose.msra.mxu0 0.0
    %585 = vmatpush.xpose.msra.mxu0 0.0
    %586 = vmatpush.xpose.msra.mxu0 0.0
    %587 = vmatpush.xpose.msra.mxu0 0.0
    %588 = vmatpush.xpose.msra.mxu0 0.0
    %589 = vmatpush.xpose.msra.mxu0 0.0
    %590 = vmatpush.xpose.msra.mxu0 0.0
    %591 = vmatpush.xpose.msra.mxu0 0.0
    %592 = vmatpush.xpose.msra.mxu0 %v575
    %593 = vmatmul.f32.gmra.mxu0 %v573
    %v594 = vpop.f32.mrf.mxu0
    %v595 = vadd.f32 0.0, %v594
    %596 = vdwg.mxu0
    %v597 = vmul.f32 %v595, 0.25
    %v598 = vadd.f32 %v597, %v533
    %v599 = vsel %vm398, %v598, -inf
    %600 = vmax.xlane.f32.xlu0 %v599
    %v601 = vpop.xlane.xlu0 %600
    %v602 = vsub.f32 %v598, %v601
    %v603 = vmul.f32 %v602, 1.442695
    %v604 = vpow.pop %v603
    %v605 = vsel %vm398, %v604, 0.0
    %606 = vadd.xlane.f32.xlu0 %v605
    %v607 = vpop.xlane.xlu0 %606
    %v608 = vrcp.pop %v607
    %v609 = vmul.f32 %v604, %v608
    %611 = vrot.lane.b32.xlu0 %v366, 112
    %v612 = vpop.permute.xlu0 %611
    %v615 = vsel %vm398, %v609, 0
    %617 = vmatpush.msra.mxu0 0.0
    %618 = vmatpush.msra.mxu0 0.0
    %619 = vmatpush.msra.mxu0 0.0
    %620 = vmatpush.msra.mxu0 0.0
    %621 = vmatpush.msra.mxu0 0.0
    %622 = vmatpush.msra.mxu0 0.0
    %623 = vmatpush.msra.mxu0 0.0
    %624 = vmatpush.msra.mxu0 0.0
    %625 = vmatpush.msra.mxu0 0.0
    %626 = vmatpush.msra.mxu0 0.0
    %627 = vmatpush.msra.mxu0 0.0
    %628 = vmatpush.msra.mxu0 0.0
    %629 = vmatpush.msra.mxu0 0.0
    %630 = vmatpush.msra.mxu0 0.0
    %631 = vmatpush.msra.mxu0 0.0
    %632 = vmatpush.msra.mxu0 %v612
    %633 = vmatmul.f32.gmra.mxu0 %v615
    %v634 = vpop.f32.mrf.mxu0
    %v635 = vadd.f32 0.0, %v634
    %636 = vdwg.mxu0
    %638 = vrot.lane.b32.xlu0 %v635, 16
    %v639 = vpop.permute.xlu0 %638
    %v641 = vsel %vm368, %v567, %v639
    %v642 = vpack.c.bf16 %v641, %v505
    %v643 = vld [vmem:[%s14] sm:$0xf]
    %v644 = vld [vmem:[%s14 + $0x4] sm:$0xf]
    %v645 = vld [vmem:[%s14 + $0x8] sm:$0xf]
    %v646 = vld [vmem:[%s14 + $0xc] sm:$0xf]
    %v647 = vld [vmem:[%s15] sm:$0x1]
    %v649 = vperm.slane %v647, 0
    %v655 = vunpack.c.l.b16 %v643
    %v656 = vunpack.c.l.b16 %v644
    %v657 = vunpack.c.l.b16 %v645
    %v658 = vunpack.c.l.b16 %v646
    %v659 = vpack.c.b16 %v656, %v655
    %v660 = vpack.c.b16 %v658, %v657
    %v664 = vsel %vm197, %v642, 0
    %666 = vmatpush.bf16.msra.mxu0 0
    %667 = vmatpush.bf16.msra.mxu0 0
    %668 = vmatpush.bf16.msra.mxu0 0
    %669 = vmatpush.bf16.msra.mxu0 0
    %670 = vmatpush.bf16.msra.mxu0 0
    %671 = vmatpush.bf16.msra.mxu0 0
    %672 = vmatpush.bf16.msra.mxu0 %v660
    %673 = vmatpush.bf16.msra.mxu0 %v659
    %674 = vmatmul.bf16.gmra.mxu0 %v664
    %v675 = vpop.f32.mrf.mxu0
    %v676 = vadd.f32 %v649, %v675
    %v677 = vpop.f32.mrf.mxu0
    %v678 = vadd.f32 %v649, %v677
    %679 = vdwg.mxu0
    %v680 = vadd.f32 %v676, %v257
    %v681 = vadd.f32 %v678, %v258
    %v682 = vld [vmem:[%s16] sm:$0x1]
    %v683 = vld [vmem:[%s17] sm:$0x1]
    %v684 = vsel %vm197, %v680, 0.0
    %685 = vadd.xlane.f32.xlu0 %v684
    %v686 = vpop.xlane.xlu0 %685
    %v687 = vsel %vm197, %v681, 0.0
    %688 = vadd.xlane.f32.xlu0 %v687
    %v689 = vpop.xlane.xlu0 %688
    %v690 = vmul.f32 %v686, %v210
    %v691 = vmul.f32 %v689, %v210
    %v692 = vsub.f32 %v680, %v690
    %v693 = vsub.f32 %v681, %v691
    %v694 = vmul.f32 %v692, %v692
    %v695 = vmul.f32 %v693, %v693
    %v696 = vsel %vm197, %v694, 0.0
    %697 = vadd.xlane.f32.xlu0 %v696
    %v698 = vpop.xlane.xlu0 %697
    %v699 = vsel %vm197, %v695, 0.0
    %700 = vadd.xlane.f32.xlu0 %v699
    %v701 = vpop.xlane.xlu0 %700
    %v702 = vmul.f32 %v698, %v210
    %v703 = vmul.f32 %v701, %v210
    %v704 = vadd.f32 %v702, 1e-12
    %v705 = vadd.f32 %v703, 1e-12
    %v706 = vrsqrt.pop %v704
    %v707 = vmul.f32 %v706, %v704
    %v708 = vmul.f32 %v707, %v706
    %v709 = vmul.f32 0.5, %v708
    %v710 = vsub.f32 1.5, %v709
    %v711 = vmul.f32 %v706, %v710
    %vm712 = vweird.f32 %v704
    %vm713 = vweird.f32 %v706
    %vm714 = vmor %vm712, %vm713
    %v715 = vsel %vm714, %v706, %v711
    %v716 = vrsqrt.pop %v705
    %v717 = vmul.f32 %v716, %v705
    %v718 = vmul.f32 %v717, %v716
    %v719 = vmul.f32 0.5, %v718
    %v720 = vsub.f32 1.5, %v719
    %v721 = vmul.f32 %v716, %v720
    %vm722 = vweird.f32 %v705
    %vm723 = vweird.f32 %v716
    %vm724 = vmor %vm722, %vm723
    %v725 = vsel %vm724, %v716, %v721
    %v726 = vmul.f32 %v692, %v715
    %v727 = vmul.f32 %v693, %v725
    %v729 = vperm.slane %v682, 0
    %v731 = vmul.f32 %v726, %v729
    %v732 = vmul.f32 %v727, %v729
    %v734 = vperm.slane %v683, 0
    %v736 = vadd.f32 %v731, %v734
    %v737 = vadd.f32 %v732, %v734
    %v738 = vpack.c.bf16 %v737, %v736
    %v739 = vld [vmem:[%s18] sm:$0xf]
    %v740 = vld [vmem:[%s18 + $0x4] sm:$0xf]
    %v741 = vld [vmem:[%s18 + $0x8] sm:$0xf]
    %v742 = vld [vmem:[%s18 + $0xc] sm:$0xf]
    %v743 = vld [vmem:[%s19] sm:$0x1]
    %v745 = vperm.slane %v743, 0
    %v751 = vunpack.c.l.b16 %v739
    %v752 = vunpack.c.l.b16 %v740
    %v753 = vunpack.c.l.b16 %v741
    %v754 = vunpack.c.l.b16 %v742
    %v755 = vpack.c.b16 %v752, %v751
    %v756 = vpack.c.b16 %v754, %v753
    %v760 = vsel %vm197, %v738, 0
    %762 = vmatpush.bf16.msra.mxu0 0
    %763 = vmatpush.bf16.msra.mxu0 0
    %764 = vmatpush.bf16.msra.mxu0 0
    %765 = vmatpush.bf16.msra.mxu0 0
    %766 = vmatpush.bf16.msra.mxu0 0
    %767 = vmatpush.bf16.msra.mxu0 0
    %768 = vmatpush.bf16.msra.mxu0 %v756
    %769 = vmatpush.bf16.msra.mxu0 %v755
    %770 = vmatmul.bf16.gmra.mxu0 %v760
    %v771 = vpop.f32.mrf.mxu0
    %v772 = vadd.f32 %v745, %v771
    %v773 = vpop.f32.mrf.mxu0
    %v774 = vadd.f32 %v745, %v773
    %775 = vdwg.mxu0
    %v776 = vmul.f32 %v772, 0.5
    %v777 = vmul.f32 %v774, 0.5
    %v778 = vmul.f32 %v772, 0.044715
    %v779 = vmul.f32 %v774, 0.044715
    %v780 = vmul.f32 %v778, %v772
    %v781 = vmul.f32 %v779, %v774
    %v782 = vmul.f32 %v780, %v772
    %v783 = vmul.f32 %v781, %v774
    %v784 = vadd.f32 %v772, %v782
    %v785 = vadd.f32 %v774, %v783
    %v786 = vmul.f32 %v784, 0.7978846
    %v787 = vmul.f32 %v785, 0.7978846
    %v788 = vtanh.pop %v786
    %v789 = vtanh.pop %v787
    %v790 = vadd.f32 %v788, 1.0
    %v791 = vadd.f32 %v789, 1.0
    %v792 = vmul.f32 %v776, %v790
    %v793 = vmul.f32 %v777, %v791
    %v794 = vpack.c.bf16 %v793, %v792
    %v795 = vld [vmem:[%s20] sm:$0xf]
    %v796 = vld [vmem:[%s20 + $0x4] sm:$0xf]
    %v797 = vld [vmem:[%s20 + $0x8] sm:$0xf]
    %v798 = vld [vmem:[%s20 + $0xc] sm:$0xf]
    %v799 = vld [vmem:[%s20 + $0x10] sm:$0xf]
    %v800 = vld [vmem:[%s20 + $0x14] sm:$0xf]
    %v801 = vld [vmem:[%s20 + $0x18] sm:$0xf]
    %v802 = vld [vmem:[%s20 + $0x1c] sm:$0xf]
    %v803 = vld [vmem:[%s21] sm:$0x1]
    %v805 = vperm.slane %v803, 0
    %v815 = vunpack.c.l.b16 %v795
    %v816 = vunpack.c.l.b16 %v796
    %v817 = vunpack.c.l.b16 %v797
    %v818 = vunpack.c.l.b16 %v798
    %v819 = vunpack.c.l.b16 %v799
    %v820 = vunpack.c.l.b16 %v800
    %v821 = vunpack.c.l.b16 %v801
    %v822 = vunpack.c.l.b16 %v802
    %v823 = vpack.c.b16 %v816, %v815
    %v824 = vpack.c.b16 %v818, %v817
    %v825 = vpack.c.b16 %v820, %v819
    %v826 = vpack.c.b16 %v822, %v821
    %vm831 = vcmask 523264
    %v833 = vsel %vm831, %v794, 0
    %835 = vmatpush.bf16.msra.mxu0 0
    %836 = vmatpush.bf16.msra.mxu0 0
    %837 = vmatpush.bf16.msra.mxu0 0
    %838 = vmatpush.bf16.msra.mxu0 0
    %839 = vmatpush.bf16.msra.mxu0 %v826
    %840 = vmatpush.bf16.msra.mxu0 %v825
    %841 = vmatpush.bf16.msra.mxu0 %v824
    %842 = vmatpush.bf16.msra.mxu0 %v823
    %843 = vmatmul.bf16.gmra.mxu0 %v833
    %v844 = vpop.f32.mrf.mxu0
    %v845 = vadd.f32 %v805, %v844
    %v846 = vpop.f32.mrf.mxu0
    %v847 = vadd.f32 %v805, %v846
    %848 = vdwg.mxu0
    %v849 = vadd.f32 %v845, %v736
    %v850 = vadd.f32 %v847, %v737
    %v851 = vld [vmem:[%s22] sm:$0x1]
    %v852 = vld [vmem:[%s23] sm:$0x1]
    %v853 = vsel %vm197, %v849, 0.0
    %854 = vadd.xlane.f32.xlu0 %v853
    %v855 = vpop.xlane.xlu0 %854
    %v856 = vsel %vm197, %v850, 0.0
    %857 = vadd.xlane.f32.xlu0 %v856
    %v858 = vpop.xlane.xlu0 %857
    %v859 = vmul.f32 %v855, %v210
    %v860 = vmul.f32 %v858, %v210
    %v861 = vsub.f32 %v849, %v859
    %v862 = vsub.f32 %v850, %v860
    %v863 = vmul.f32 %v861, %v861
    %v864 = vmul.f32 %v862, %v862
    %v865 = vsel %vm197, %v863, 0.0
    %866 = vadd.xlane.f32.xlu0 %v865
    %v867 = vpop.xlane.xlu0 %866
    %v868 = vsel %vm197, %v864, 0.0
    %869 = vadd.xlane.f32.xlu0 %v868
    %v870 = vpop.xlane.xlu0 %869
    %v871 = vmul.f32 %v867, %v210
    %v872 = vmul.f32 %v870, %v210
    %v873 = vadd.f32 %v871, 1e-12
    %v874 = vadd.f32 %v872, 1e-12
    %v875 = vrsqrt.pop %v873
    %v876 = vmul.f32 %v875, %v873
    %v877 = vmul.f32 %v876, %v875
    %v878 = vmul.f32 0.5, %v877
    %v879 = vsub.f32 1.5, %v878
    %v880 = vmul.f32 %v875, %v879
    %vm881 = vweird.f32 %v873
    %vm882 = vweird.f32 %v875
    %vm883 = vmor %vm881, %vm882
    %v884 = vsel %vm883, %v875, %v880
    %v885 = vrsqrt.pop %v874
    %v886 = vmul.f32 %v885, %v874
    %v887 = vmul.f32 %v886, %v885
    %v888 = vmul.f32 0.5, %v887
    %v889 = vsub.f32 1.5, %v888
    %v890 = vmul.f32 %v885, %v889
    %vm891 = vweird.f32 %v874
    %vm892 = vweird.f32 %v885
    %vm893 = vmor %vm891, %vm892
    %v894 = vsel %vm893, %v885, %v890
    %v895 = vmul.f32 %v861, %v884
    %v896 = vmul.f32 %v862, %v894
    %v898 = vperm.slane %v851, 0
    %v900 = vmul.f32 %v895, %v898
    %v901 = vmul.f32 %v896, %v898
    %v903 = vperm.slane %v852, 0
    %v905 = vadd.f32 %v900, %v903
    %v906 = vadd.f32 %v901, %v903
    %v907 = vpack.c.bf16 %v906, %v905
    %s908 = scalar_lea.vmem %s8, 16
    %v909 = vld [vmem:[%s908] sm:$0xf]
    %v910 = vld [vmem:[%s908 + $0x4] sm:$0xf]
    %v911 = vld [vmem:[%s908 + $0x8] sm:$0xf]
    %v912 = vld [vmem:[%s908 + $0xc] sm:$0xf]
    %s913 = scalar_lea.vmem %s9, 1
    %v914 = vld [vmem:[%s913] sm:$0x1]
    %v916 = vperm.slane %v914, 0
    %v922 = vunpack.c.l.b16 %v909
    %v923 = vunpack.c.l.b16 %v910
    %v924 = vunpack.c.l.b16 %v911
    %v925 = vunpack.c.l.b16 %v912
    %v926 = vpack.c.b16 %v923, %v922
    %v927 = vpack.c.b16 %v925, %v924
    %v931 = vsel %vm197, %v907, 0
    %933 = vmatpush.bf16.msra.mxu0 0
    %934 = vmatpush.bf16.msra.mxu0 0
    %935 = vmatpush.bf16.msra.mxu0 0
    %936 = vmatpush.bf16.msra.mxu0 0
    %937 = vmatpush.bf16.msra.mxu0 0
    %938 = vmatpush.bf16.msra.mxu0 0
    %939 = vmatpush.bf16.msra.mxu0 %v927
    %940 = vmatpush.bf16.msra.mxu0 %v926
    %941 = vmatmul.bf16.gmra.mxu0 %v931
    %v942 = vpop.f32.mrf.mxu0
    %v943 = vadd.f32 %v916, %v942
    %v944 = vpop.f32.mrf.mxu0
    %v945 = vadd.f32 %v916, %v944
    %946 = vdwg.mxu0
    %s947 = scalar_lea.vmem %s10, 16
    %v948 = vld [vmem:[%s947] sm:$0xf]
    %v949 = vld [vmem:[%s947 + $0x4] sm:$0xf]
    %v950 = vld [vmem:[%s947 + $0x8] sm:$0xf]
    %v951 = vld [vmem:[%s947 + $0xc] sm:$0xf]
    %s952 = scalar_lea.vmem %s11, 1
    %v953 = vld [vmem:[%s952] sm:$0x1]
    %v955 = vperm.slane %v953, 0
    %v961 = vunpack.c.l.b16 %v948
    %v962 = vunpack.c.l.b16 %v949
    %v963 = vunpack.c.l.b16 %v950
    %v964 = vunpack.c.l.b16 %v951
    %v965 = vpack.c.b16 %v962, %v961
    %v966 = vpack.c.b16 %v964, %v963
    %969 = vmatpush.bf16.msra.mxu0 0
    %970 = vmatpush.bf16.msra.mxu0 0
    %971 = vmatpush.bf16.msra.mxu0 0
    %972 = vmatpush.bf16.msra.mxu0 0
    %973 = vmatpush.bf16.msra.mxu0 0
    %974 = vmatpush.bf16.msra.mxu0 0
    %975 = vmatpush.bf16.msra.mxu0 %v966
    %976 = vmatpush.bf16.msra.mxu0 %v965
    %977 = vmatmul.bf16.gmra.mxu0 %v931
    %v978 = vpop.f32.mrf.mxu0
    %v979 = vadd.f32 %v955, %v978
    %v980 = vpop.f32.mrf.mxu0
    %v981 = vadd.f32 %v955, %v980
    %982 = vdwg.mxu0
    %s983 = scalar_lea.vmem %s12, 16
    %v984 = vld [vmem:[%s983] sm:$0xf]
    %v985 = vld [vmem:[%s983 + $0x4] sm:$0xf]
    %v986 = vld [vmem:[%s983 + $0x8] sm:$0xf]
    %v987 = vld [vmem:[%s983 + $0xc] sm:$0xf]
    %s988 = scalar_lea.vmem %s13, 1
    %v989 = vld [vmem:[%s988] sm:$0x1]
    %v991 = vperm.slane %v989, 0
    %v997 = vunpack.c.l.b16 %v984
    %v998 = vunpack.c.l.b16 %v985
    %v999 = vunpack.c.l.b16 %v986
    %v1000 = vunpack.c.l.b16 %v987
    %v1001 = vpack.c.b16 %v998, %v997
    %v1002 = vpack.c.b16 %v1000, %v999
    %1005 = vmatpush.bf16.msra.mxu0 0
    %1006 = vmatpush.bf16.msra.mxu0 0
    %1007 = vmatpush.bf16.msra.mxu0 0
    %1008 = vmatpush.bf16.msra.mxu0 0
    %1009 = vmatpush.bf16.msra.mxu0 0
    %1010 = vmatpush.bf16.msra.mxu0 0
    %1011 = vmatpush.bf16.msra.mxu0 %v1002
    %1012 = vmatpush.bf16.msra.mxu0 %v1001
    %1013 = vmatmul.bf16.gmra.mxu0 %v931
    %v1014 = vpop.f32.mrf.mxu0
    %v1015 = vadd.f32 %v991, %v1014
    %v1016 = vpop.f32.mrf.mxu0
    %v1017 = vadd.f32 %v991, %v1016
    %1018 = vdwg.mxu0
    %v1020 = vsel %vm368, %v943, 0
    %v1023 = vsel %vm368, %v979, 0
    %1025 = vmatpush.xpose.msra.mxu0 0.0
    %1026 = vmatpush.xpose.msra.mxu0 0.0
    %1027 = vmatpush.xpose.msra.mxu0 0.0
    %1028 = vmatpush.xpose.msra.mxu0 0.0
    %1029 = vmatpush.xpose.msra.mxu0 0.0
    %1030 = vmatpush.xpose.msra.mxu0 0.0
    %1031 = vmatpush.xpose.msra.mxu0 0.0
    %1032 = vmatpush.xpose.msra.mxu0 0.0
    %1033 = vmatpush.xpose.msra.mxu0 0.0
    %1034 = vmatpush.xpose.msra.mxu0 0.0
    %1035 = vmatpush.xpose.msra.mxu0 0.0
    %1036 = vmatpush.xpose.msra.mxu0 0.0
    %1037 = vmatpush.xpose.msra.mxu0 0.0
    %1038 = vmatpush.xpose.msra.mxu0 0.0
    %1039 = vmatpush.xpose.msra.mxu0 0.0
    %1040 = vmatpush.xpose.msra.mxu0 %v1023
    %1041 = vmatmul.f32.gmra.mxu0 %v1020
    %v1042 = vpop.f32.mrf.mxu0
    %v1043 = vadd.f32 0.0, %v1042
    %1044 = vdwg.mxu0
    %v1045 = vmul.f32 %v1043, 0.25
    %v1046 = vadd.f32 %v1045, %v396
    %v1047 = vsel %vm398, %v1046, -inf
    %1048 = vmax.xlane.f32.xlu0 %v1047
    %v1049 = vpop.xlane.xlu0 %1048
    %v1050 = vsub.f32 %v1046, %v1049
    %v1051 = vmul.f32 %v1050, 1.442695
    %v1052 = vpow.pop %v1051
    %v1053 = vsel %vm398, %v1052, 0.0
    %1054 = vadd.xlane.f32.xlu0 %v1053
    %v1055 = vpop.xlane.xlu0 %1054
    %v1056 = vrcp.pop %v1055
    %v1057 = vmul.f32 %v1052, %v1056
    %v1059 = vsel %vm398, %v1057, 0
    %1061 = vmatpush.msra.mxu0 0.0
    %1062 = vmatpush.msra.mxu0 0.0
    %1063 = vmatpush.msra.mxu0 0.0
    %1064 = vmatpush.msra.mxu0 0.0
    %1065 = vmatpush.msra.mxu0 0.0
    %1066 = vmatpush.msra.mxu0 0.0
    %1067 = vmatpush.msra.mxu0 0.0
    %1068 = vmatpush.msra.mxu0 0.0
    %1069 = vmatpush.msra.mxu0 0.0
    %1070 = vmatpush.msra.mxu0 0.0
    %1071 = vmatpush.msra.mxu0 0.0
    %1072 = vmatpush.msra.mxu0 0.0
    %1073 = vmatpush.msra.mxu0 0.0
    %1074 = vmatpush.msra.mxu0 0.0
    %1075 = vmatpush.msra.mxu0 0.0
    %1076 = vmatpush.msra.mxu0 %v1015
    %1077 = vmatmul.f32.gmra.mxu0 %v1059
    %v1078 = vpop.f32.mrf.mxu0
    %v1079 = vadd.f32 0.0, %v1078
    %1080 = vdwg.mxu0
    %1081 = vrot.lane.b32.xlu0 %v943, 112
    %v1082 = vpop.permute.xlu0 %1081
    %1083 = vrot.lane.b32.xlu0 %v979, 112
    %v1084 = vpop.permute.xlu0 %1083
    %v1085 = vsel %vm368, %v1082, 0
    %v1087 = vsel %vm368, %v1084, 0
    %1089 = vmatpush.xpose.msra.mxu0 0.0
    %1090 = vmatpush.xpose.msra.mxu0 0.0
    %1091 = vmatpush.xpose.msra.mxu0 0.0
    %1092 = vmatpush.xpose.msra.mxu0 0.0
    %1093 = vmatpush.xpose.msra.mxu0 0.0
    %1094 = vmatpush.xpose.msra.mxu0 0.0
    %1095 = vmatpush.xpose.msra.mxu0 0.0
    %1096 = vmatpush.xpose.msra.mxu0 0.0
    %1097 = vmatpush.xpose.msra.mxu0 0.0
    %1098 = vmatpush.xpose.msra.mxu0 0.0
    %1099 = vmatpush.xpose.msra.mxu0 0.0
    %1100 = vmatpush.xpose.msra.mxu0 0.0
    %1101 = vmatpush.xpose.msra.mxu0 0.0
    %1102 = vmatpush.xpose.msra.mxu0 0.0
    %1103 = vmatpush.xpose.msra.mxu0 0.0
    %1104 = vmatpush.xpose.msra.mxu0 %v1087
    %1105 = vmatmul.f32.gmra.mxu0 %v1085
    %v1106 = vpop.f32.mrf.mxu0
    %v1107 = vadd.f32 0.0, %v1106
    %1108 = vdwg.mxu0
    %v1109 = vmul.f32 %v1107, 0.25
    %v1110 = vadd.f32 %v1109, %v396
    %v1111 = vsel %vm398, %v1110, -inf
    %1112 = vmax.xlane.f32.xlu0 %v1111
    %v1113 = vpop.xlane.xlu0 %1112
    %v1114 = vsub.f32 %v1110, %v1113
    %v1115 = vmul.f32 %v1114, 1.442695
    %v1116 = vpow.pop %v1115
    %v1117 = vsel %vm398, %v1116, 0.0
    %1118 = vadd.xlane.f32.xlu0 %v1117
    %v1119 = vpop.xlane.xlu0 %1118
    %v1120 = vrcp.pop %v1119
    %v1121 = vmul.f32 %v1116, %v1120
    %1123 = vrot.lane.b32.xlu0 %v1015, 112
    %v1124 = vpop.permute.xlu0 %1123
    %v1127 = vsel %vm398, %v1121, 0
    %1129 = vmatpush.msra.mxu0 0.0
    %1130 = vmatpush.msra.mxu0 0.0
    %1131 = vmatpush.msra.mxu0 0.0
    %1132 = vmatpush.msra.mxu0 0.0
    %1133 = vmatpush.msra.mxu0 0.0
    %1134 = vmatpush.msra.mxu0 0.0
    %1135 = vmatpush.msra.mxu0 0.0
    %1136 = vmatpush.msra.mxu0 0.0
    %1137 = vmatpush.msra.mxu0 0.0
    %1138 = vmatpush.msra.mxu0 0.0
    %1139 = vmatpush.msra.mxu0 0.0
    %1140 = vmatpush.msra.mxu0 0.0
    %1141 = vmatpush.msra.mxu0 0.0
    %1142 = vmatpush.msra.mxu0 0.0
    %1143 = vmatpush.msra.mxu0 0.0
    %1144 = vmatpush.msra.mxu0 %v1124
    %1145 = vmatmul.f32.gmra.mxu0 %v1127
    %v1146 = vpop.f32.mrf.mxu0
    %v1147 = vadd.f32 0.0, %v1146
    %1148 = vdwg.mxu0
    %1150 = vrot.lane.b32.xlu0 %v1147, 16
    %v1151 = vpop.permute.xlu0 %1150
    %v1153 = vsel %vm368, %v1079, %v1151
    %v1155 = vsel %vm368, %v945, 0
    %v1158 = vsel %vm368, %v981, 0
    %1160 = vmatpush.xpose.msra.mxu0 0.0
    %1161 = vmatpush.xpose.msra.mxu0 0.0
    %1162 = vmatpush.xpose.msra.mxu0 0.0
    %1163 = vmatpush.xpose.msra.mxu0 0.0
    %1164 = vmatpush.xpose.msra.mxu0 0.0
    %1165 = vmatpush.xpose.msra.mxu0 0.0
    %1166 = vmatpush.xpose.msra.mxu0 0.0
    %1167 = vmatpush.xpose.msra.mxu0 0.0
    %1168 = vmatpush.xpose.msra.mxu0 0.0
    %1169 = vmatpush.xpose.msra.mxu0 0.0
    %1170 = vmatpush.xpose.msra.mxu0 0.0
    %1171 = vmatpush.xpose.msra.mxu0 0.0
    %1172 = vmatpush.xpose.msra.mxu0 0.0
    %1173 = vmatpush.xpose.msra.mxu0 0.0
    %1174 = vmatpush.xpose.msra.mxu0 0.0
    %1175 = vmatpush.xpose.msra.mxu0 %v1158
    %1176 = vmatmul.f32.gmra.mxu0 %v1155
    %v1177 = vpop.f32.mrf.mxu0
    %v1178 = vadd.f32 0.0, %v1177
    %1179 = vdwg.mxu0
    %v1180 = vmul.f32 %v1178, 0.25
    %v1181 = vadd.f32 %v1180, %v533
    %v1182 = vsel %vm398, %v1181, -inf
    %1183 = vmax.xlane.f32.xlu0 %v1182
    %v1184 = vpop.xlane.xlu0 %1183
    %v1185 = vsub.f32 %v1181, %v1184
    %v1186 = vmul.f32 %v1185, 1.442695
    %v1187 = vpow.pop %v1186
    %v1188 = vsel %vm398, %v1187, 0.0
    %1189 = vadd.xlane.f32.xlu0 %v1188
    %v1190 = vpop.xlane.xlu0 %1189
    %v1191 = vrcp.pop %v1190
    %v1192 = vmul.f32 %v1187, %v1191
    %v1194 = vsel %vm398, %v1192, 0
    %1196 = vmatpush.msra.mxu0 0.0
    %1197 = vmatpush.msra.mxu0 0.0
    %1198 = vmatpush.msra.mxu0 0.0
    %1199 = vmatpush.msra.mxu0 0.0
    %1200 = vmatpush.msra.mxu0 0.0
    %1201 = vmatpush.msra.mxu0 0.0
    %1202 = vmatpush.msra.mxu0 0.0
    %1203 = vmatpush.msra.mxu0 0.0
    %1204 = vmatpush.msra.mxu0 0.0
    %1205 = vmatpush.msra.mxu0 0.0
    %1206 = vmatpush.msra.mxu0 0.0
    %1207 = vmatpush.msra.mxu0 0.0
    %1208 = vmatpush.msra.mxu0 0.0
    %1209 = vmatpush.msra.mxu0 0.0
    %1210 = vmatpush.msra.mxu0 0.0
    %1211 = vmatpush.msra.mxu0 %v1017
    %1212 = vmatmul.f32.gmra.mxu0 %v1194
    %v1213 = vpop.f32.mrf.mxu0
    %v1214 = vadd.f32 0.0, %v1213
    %1215 = vdwg.mxu0
    %1216 = vrot.lane.b32.xlu0 %v945, 112
    %v1217 = vpop.permute.xlu0 %1216
    %1218 = vrot.lane.b32.xlu0 %v981, 112
    %v1219 = vpop.permute.xlu0 %1218
    %v1220 = vsel %vm368, %v1217, 0
    %v1222 = vsel %vm368, %v1219, 0
    %1224 = vmatpush.xpose.msra.mxu0 0.0
    %1225 = vmatpush.xpose.msra.mxu0 0.0
    %1226 = vmatpush.xpose.msra.mxu0 0.0
    %1227 = vmatpush.xpose.msra.mxu0 0.0
    %1228 = vmatpush.xpose.msra.mxu0 0.0
    %1229 = vmatpush.xpose.msra.mxu0 0.0
    %1230 = vmatpush.xpose.msra.mxu0 0.0
    %1231 = vmatpush.xpose.msra.mxu0 0.0
    %1232 = vmatpush.xpose.msra.mxu0 0.0
    %1233 = vmatpush.xpose.msra.mxu0 0.0
    %1234 = vmatpush.xpose.msra.mxu0 0.0
    %1235 = vmatpush.xpose.msra.mxu0 0.0
    %1236 = vmatpush.xpose.msra.mxu0 0.0
    %1237 = vmatpush.xpose.msra.mxu0 0.0
    %1238 = vmatpush.xpose.msra.mxu0 0.0
    %1239 = vmatpush.xpose.msra.mxu0 %v1222
    %1240 = vmatmul.f32.gmra.mxu0 %v1220
    %v1241 = vpop.f32.mrf.mxu0
    %v1242 = vadd.f32 0.0, %v1241
    %1243 = vdwg.mxu0
    %v1244 = vmul.f32 %v1242, 0.25
    %v1245 = vadd.f32 %v1244, %v533
    %v1246 = vsel %vm398, %v1245, -inf
    %1247 = vmax.xlane.f32.xlu0 %v1246
    %v1248 = vpop.xlane.xlu0 %1247
    %v1249 = vsub.f32 %v1245, %v1248
    %v1250 = vmul.f32 %v1249, 1.442695
    %v1251 = vpow.pop %v1250
    %v1252 = vsel %vm398, %v1251, 0.0
    %1253 = vadd.xlane.f32.xlu0 %v1252
    %v1254 = vpop.xlane.xlu0 %1253
    %v1255 = vrcp.pop %v1254
    %v1256 = vmul.f32 %v1251, %v1255
    %1258 = vrot.lane.b32.xlu0 %v1017, 112
    %v1259 = vpop.permute.xlu0 %1258
    %v1262 = vsel %vm398, %v1256, 0
    %1264 = vmatpush.msra.mxu0 0.0
    %1265 = vmatpush.msra.mxu0 0.0
    %1266 = vmatpush.msra.mxu0 0.0
    %1267 = vmatpush.msra.mxu0 0.0
    %1268 = vmatpush.msra.mxu0 0.0
    %1269 = vmatpush.msra.mxu0 0.0
    %1270 = vmatpush.msra.mxu0 0.0
    %1271 = vmatpush.msra.mxu0 0.0
    %1272 = vmatpush.msra.mxu0 0.0
    %1273 = vmatpush.msra.mxu0 0.0
    %1274 = vmatpush.msra.mxu0 0.0
    %1275 = vmatpush.msra.mxu0 0.0
    %1276 = vmatpush.msra.mxu0 0.0
    %1277 = vmatpush.msra.mxu0 0.0
    %1278 = vmatpush.msra.mxu0 0.0
    %1279 = vmatpush.msra.mxu0 %v1259
    %1280 = vmatmul.f32.gmra.mxu0 %v1262
    %v1281 = vpop.f32.mrf.mxu0
    %v1282 = vadd.f32 0.0, %v1281
    %1283 = vdwg.mxu0
    %1285 = vrot.lane.b32.xlu0 %v1282, 16
    %v1286 = vpop.permute.xlu0 %1285
    %v1288 = vsel %vm368, %v1214, %v1286
    %v1289 = vpack.c.bf16 %v1288, %v1153
    %s1290 = scalar_lea.vmem %s14, 16
    %v1291 = vld [vmem:[%s1290] sm:$0xf]
    %v1292 = vld [vmem:[%s1290 + $0x4] sm:$0xf]
    %v1293 = vld [vmem:[%s1290 + $0x8] sm:$0xf]
    %v1294 = vld [vmem:[%s1290 + $0xc] sm:$0xf]
    %s1295 = scalar_lea.vmem %s15, 1
    %v1296 = vld [vmem:[%s1295] sm:$0x1]
    %v1298 = vperm.slane %v1296, 0
    %v1304 = vunpack.c.l.b16 %v1291
    %v1305 = vunpack.c.l.b16 %v1292
    %v1306 = vunpack.c.l.b16 %v1293
    %v1307 = vunpack.c.l.b16 %v1294
    %v1308 = vpack.c.b16 %v1305, %v1304
    %v1309 = vpack.c.b16 %v1307, %v1306
    %v1313 = vsel %vm197, %v1289, 0
    %1315 = vmatpush.bf16.msra.mxu0 0
    %1316 = vmatpush.bf16.msra.mxu0 0
    %1317 = vmatpush.bf16.msra.mxu0 0
    %1318 = vmatpush.bf16.msra.mxu0 0
    %1319 = vmatpush.bf16.msra.mxu0 0
    %1320 = vmatpush.bf16.msra.mxu0 0
    %1321 = vmatpush.bf16.msra.mxu0 %v1309
    %1322 = vmatpush.bf16.msra.mxu0 %v1308
    %1323 = vmatmul.bf16.gmra.mxu0 %v1313
    %v1324 = vpop.f32.mrf.mxu0
    %v1325 = vadd.f32 %v1298, %v1324
    %v1326 = vpop.f32.mrf.mxu0
    %v1327 = vadd.f32 %v1298, %v1326
    %1328 = vdwg.mxu0
    %v1329 = vadd.f32 %v1325, %v905
    %v1330 = vadd.f32 %v1327, %v906
    %s1331 = scalar_lea.vmem %s16, 1
    %v1332 = vld [vmem:[%s1331] sm:$0x1]
    %s1333 = scalar_lea.vmem %s17, 1
    %v1334 = vld [vmem:[%s1333] sm:$0x1]
    %v1335 = vsel %vm197, %v1329, 0.0
    %1336 = vadd.xlane.f32.xlu0 %v1335
    %v1337 = vpop.xlane.xlu0 %1336
    %v1338 = vsel %vm197, %v1330, 0.0
    %1339 = vadd.xlane.f32.xlu0 %v1338
    %v1340 = vpop.xlane.xlu0 %1339
    %v1341 = vmul.f32 %v1337, %v210
    %v1342 = vmul.f32 %v1340, %v210
    %v1343 = vsub.f32 %v1329, %v1341
    %v1344 = vsub.f32 %v1330, %v1342
    %v1345 = vmul.f32 %v1343, %v1343
    %v1346 = vmul.f32 %v1344, %v1344
    %v1347 = vsel %vm197, %v1345, 0.0
    %1348 = vadd.xlane.f32.xlu0 %v1347
    %v1349 = vpop.xlane.xlu0 %1348
    %v1350 = vsel %vm197, %v1346, 0.0
    %1351 = vadd.xlane.f32.xlu0 %v1350
    %v1352 = vpop.xlane.xlu0 %1351
    %v1353 = vmul.f32 %v1349, %v210
    %v1354 = vmul.f32 %v1352, %v210
    %v1355 = vadd.f32 %v1353, 1e-12
    %v1356 = vadd.f32 %v1354, 1e-12
    %v1357 = vrsqrt.pop %v1355
    %v1358 = vmul.f32 %v1357, %v1355
    %v1359 = vmul.f32 %v1358, %v1357
    %v1360 = vmul.f32 0.5, %v1359
    %v1361 = vsub.f32 1.5, %v1360
    %v1362 = vmul.f32 %v1357, %v1361
    %vm1363 = vweird.f32 %v1355
    %vm1364 = vweird.f32 %v1357
    %vm1365 = vmor %vm1363, %vm1364
    %v1366 = vsel %vm1365, %v1357, %v1362
    %v1367 = vrsqrt.pop %v1356
    %v1368 = vmul.f32 %v1367, %v1356
    %v1369 = vmul.f32 %v1368, %v1367
    %v1370 = vmul.f32 0.5, %v1369
    %v1371 = vsub.f32 1.5, %v1370
    %v1372 = vmul.f32 %v1367, %v1371
    %vm1373 = vweird.f32 %v1356
    %vm1374 = vweird.f32 %v1367
    %vm1375 = vmor %vm1373, %vm1374
    %v1376 = vsel %vm1375, %v1367, %v1372
    %v1377 = vmul.f32 %v1343, %v1366
    %v1378 = vmul.f32 %v1344, %v1376
    %v1380 = vperm.slane %v1332, 0
    %v1382 = vmul.f32 %v1377, %v1380
    %v1383 = vmul.f32 %v1378, %v1380
    %v1385 = vperm.slane %v1334, 0
    %v1387 = vadd.f32 %v1382, %v1385
    %v1388 = vadd.f32 %v1383, %v1385
    %v1389 = vpack.c.bf16 %v1388, %v1387
    %s1390 = scalar_lea.vmem %s18, 16
    %v1391 = vld [vmem:[%s1390] sm:$0xf]
    %v1392 = vld [vmem:[%s1390 + $0x4] sm:$0xf]
    %v1393 = vld [vmem:[%s1390 + $0x8] sm:$0xf]
    %v1394 = vld [vmem:[%s1390 + $0xc] sm:$0xf]
    %s1395 = scalar_lea.vmem %s19, 1
    %v1396 = vld [vmem:[%s1395] sm:$0x1]
    %v1398 = vperm.slane %v1396, 0
    %v1404 = vunpack.c.l.b16 %v1391
    %v1405 = vunpack.c.l.b16 %v1392
    %v1406 = vunpack.c.l.b16 %v1393
    %v1407 = vunpack.c.l.b16 %v1394
    %v1408 = vpack.c.b16 %v1405, %v1404
    %v1409 = vpack.c.b16 %v1407, %v1406
    %v1413 = vsel %vm197, %v1389, 0
    %1415 = vmatpush.bf16.msra.mxu0 0
    %1416 = vmatpush.bf16.msra.mxu0 0
    %1417 = vmatpush.bf16.msra.mxu0 0
    %1418 = vmatpush.bf16.msra.mxu0 0
    %1419 = vmatpush.bf16.msra.mxu0 0
    %1420 = vmatpush.bf16.msra.mxu0 0
    %1421 = vmatpush.bf16.msra.mxu0 %v1409
    %1422 = vmatpush.bf16.msra.mxu0 %v1408
    %1423 = vmatmul.bf16.gmra.mxu0 %v1413
    %v1424 = vpop.f32.mrf.mxu0
    %v1425 = vadd.f32 %v1398, %v1424
    %v1426 = vpop.f32.mrf.mxu0
    %v1427 = vadd.f32 %v1398, %v1426
    %1428 = vdwg.mxu0
    %v1429 = vmul.f32 %v1425, 0.5
    %v1430 = vmul.f32 %v1427, 0.5
    %v1431 = vmul.f32 %v1425, 0.044715
    %v1432 = vmul.f32 %v1427, 0.044715
    %v1433 = vmul.f32 %v1431, %v1425
    %v1434 = vmul.f32 %v1432, %v1427
    %v1435 = vmul.f32 %v1433, %v1425
    %v1436 = vmul.f32 %v1434, %v1427
    %v1437 = vadd.f32 %v1425, %v1435
    %v1438 = vadd.f32 %v1427, %v1436
    %v1439 = vmul.f32 %v1437, 0.7978846
    %v1440 = vmul.f32 %v1438, 0.7978846
    %v1441 = vtanh.pop %v1439
    %v1442 = vtanh.pop %v1440
    %v1443 = vadd.f32 %v1441, 1.0
    %v1444 = vadd.f32 %v1442, 1.0
    %v1445 = vmul.f32 %v1429, %v1443
    %v1446 = vmul.f32 %v1430, %v1444
    %v1447 = vpack.c.bf16 %v1446, %v1445
    %s1448 = scalar_lea.vmem %s20, 32
    %v1449 = vld [vmem:[%s1448] sm:$0xf]
    %v1450 = vld [vmem:[%s1448 + $0x4] sm:$0xf]
    %v1451 = vld [vmem:[%s1448 + $0x8] sm:$0xf]
    %v1452 = vld [vmem:[%s1448 + $0xc] sm:$0xf]
    %v1453 = vld [vmem:[%s1448 + $0x10] sm:$0xf]
    %v1454 = vld [vmem:[%s1448 + $0x14] sm:$0xf]
    %v1455 = vld [vmem:[%s1448 + $0x18] sm:$0xf]
    %v1456 = vld [vmem:[%s1448 + $0x1c] sm:$0xf]
    %s1457 = scalar_lea.vmem %s21, 1
    %v1458 = vld [vmem:[%s1457] sm:$0x1]
    %v1460 = vperm.slane %v1458, 0
    %v1470 = vunpack.c.l.b16 %v1449
    %v1471 = vunpack.c.l.b16 %v1450
    %v1472 = vunpack.c.l.b16 %v1451
    %v1473 = vunpack.c.l.b16 %v1452
    %v1474 = vunpack.c.l.b16 %v1453
    %v1475 = vunpack.c.l.b16 %v1454
    %v1476 = vunpack.c.l.b16 %v1455
    %v1477 = vunpack.c.l.b16 %v1456
    %v1478 = vpack.c.b16 %v1471, %v1470
    %v1479 = vpack.c.b16 %v1473, %v1472
    %v1480 = vpack.c.b16 %v1475, %v1474
    %v1481 = vpack.c.b16 %v1477, %v1476
    %v1487 = vsel %vm831, %v1447, 0
    %1489 = vmatpush.bf16.msra.mxu0 0
    %1490 = vmatpush.bf16.msra.mxu0 0
    %1491 = vmatpush.bf16.msra.mxu0 0
    %1492 = vmatpush.bf16.msra.mxu0 0
    %1493 = vmatpush.bf16.msra.mxu0 %v1481
    %1494 = vmatpush.bf16.msra.mxu0 %v1480
    %1495 = vmatpush.bf16.msra.mxu0 %v1479
    %1496 = vmatpush.bf16.msra.mxu0 %v1478
    %1497 = vmatmul.bf16.gmra.mxu0 %v1487
    %v1498 = vpop.f32.mrf.mxu0
    %v1499 = vadd.f32 %v1460, %v1498
    %v1500 = vpop.f32.mrf.mxu0
    %v1501 = vadd.f32 %v1460, %v1500
    %1502 = vdwg.mxu0
    %v1503 = vadd.f32 %v1499, %v1387
    %v1504 = vadd.f32 %v1501, %v1388
    %s1505 = scalar_lea.vmem %s22, 1
    %v1506 = vld [vmem:[%s1505] sm:$0x1]
    %s1507 = scalar_lea.vmem %s23, 1
    %v1508 = vld [vmem:[%s1507] sm:$0x1]
    %v1509 = vsel %vm197, %v1503, 0.0
    %1510 = vadd.xlane.f32.xlu0 %v1509
    %v1511 = vpop.xlane.xlu0 %1510
    %v1512 = vsel %vm197, %v1504, 0.0
    %1513 = vadd.xlane.f32.xlu0 %v1512
    %v1514 = vpop.xlane.xlu0 %1513
    %v1515 = vmul.f32 %v1511, %v210
    %v1516 = vmul.f32 %v1514, %v210
    %v1517 = vsub.f32 %v1503, %v1515
    %v1518 = vsub.f32 %v1504, %v1516
    %v1519 = vmul.f32 %v1517, %v1517
    %v1520 = vmul.f32 %v1518, %v1518
    %v1521 = vsel %vm197, %v1519, 0.0
    %1522 = vadd.xlane.f32.xlu0 %v1521
    %v1523 = vpop.xlane.xlu0 %1522
    %v1524 = vsel %vm197, %v1520, 0.0
    %1525 = vadd.xlane.f32.xlu0 %v1524
    %v1526 = vpop.xlane.xlu0 %1525
    %v1527 = vmul.f32 %v1523, %v210
    %v1528 = vmul.f32 %v1526, %v210
    %v1529 = vadd.f32 %v1527, 1e-12
    %v1530 = vadd.f32 %v1528, 1e-12
    %v1531 = vrsqrt.pop %v1529
    %v1532 = vmul.f32 %v1531, %v1529
    %v1533 = vmul.f32 %v1532, %v1531
    %v1534 = vmul.f32 0.5, %v1533
    %v1535 = vsub.f32 1.5, %v1534
    %v1536 = vmul.f32 %v1531, %v1535
    %vm1537 = vweird.f32 %v1529
    %vm1538 = vweird.f32 %v1531
    %vm1539 = vmor %vm1537, %vm1538
    %v1540 = vsel %vm1539, %v1531, %v1536
    %v1541 = vrsqrt.pop %v1530
    %v1542 = vmul.f32 %v1541, %v1530
    %v1543 = vmul.f32 %v1542, %v1541
    %v1544 = vmul.f32 0.5, %v1543
    %v1545 = vsub.f32 1.5, %v1544
    %v1546 = vmul.f32 %v1541, %v1545
    %vm1547 = vweird.f32 %v1530
    %vm1548 = vweird.f32 %v1541
    %vm1549 = vmor %vm1547, %vm1548
    %v1550 = vsel %vm1549, %v1541, %v1546
    %v1551 = vmul.f32 %v1517, %v1540
    %v1552 = vmul.f32 %v1518, %v1550
    %v1554 = vperm.slane %v1506, 0
    %v1556 = vmul.f32 %v1551, %v1554
    %v1557 = vmul.f32 %v1552, %v1554
    %v1559 = vperm.slane %v1508, 0
    %v1561 = vadd.f32 %v1556, %v1559
    %v1562 = vadd.f32 %v1557, %v1559
    %1563 = vst.msk [vmem:[#allocation2] sm:$0xff] %vm197, %v1561
    %1564 = vst.msk [vmem:[#allocation2 + $0x8] sm:$0xff] %vm197, %v1562
    // Predicated region
    $region98: #{tpu_custom_call.1} parent=1 // pred_check
      _
    $region99: #{tpu_custom_call.1} parent=1 // pred_check_branch
      %1566 = sbr.rel (0) target = $region101
    $region100: #{tpu_custom_call.1} parent=1 // pred_region
      %1568 = vsyncadd [#allocation3], 0
      %s1569 = sshll.u32 [#allocation2], 4
      %s1570 = int_to_ptr.vmem [resolvable:$true] %s1569
      %s1571 = sshll.u32 %s24, 4
      %s1572 = int_to_ptr.hbm [resolvable:$true] %s1571
      %1577 = dma.vmem_to_hbm [thread:$0]  %s1570, 256, %s1572, [#allocation3], 128, 128, 8
    $region101: #{tpu_custom_call.1} parent=1 // pred_fallthru
      _
    // Predicated region
    $region102: #{tpu_custom_call.1} parent=1 // pred_check
      _
    $region103: #{tpu_custom_call.1} parent=1 // pred_check_branch
      %1579 = sbr.rel (0) target = $region105
    $region104: #{tpu_custom_call.1} parent=1 // pred_region
      %1581 = dma.done [#allocation3], 256
    $region105: #{tpu_custom_call.1} parent=1 // pred_fallthru
      _
    %1582 = vsyncpa [#allocation3], 1

</llo_original>
